<compile_context>
chip_gen: v6e
topology: v6e:2x2x1
jax: 0.10.0
libtpu: 0.0.40
codegen_flags: <defaults>
</compile_context>

<pallas_src>
import jax
import jax.numpy as jnp
from jax.experimental import pallas as pl
from jax.experimental.pallas import tpu as pltpu


# ----------------------------- kernel ---------------------------------------

def gcn_block_kernel(counts_ref, kidx_ref, x_ref, w_ref, b_ref, adj_ref, out_ref):
    # counts_ref: (n_i,)        SMEM: number of nonzero src blocks per dst tile
    # kidx_ref:   (n_i * n_k,)  SMEM: src block ids (nonzero first, tail padded
    #                           with the last valid id -> repeated index, no DMA)
    # x_ref:      (tk, d_in)    gathered src-node feature tile (compute dtype)
    # w_ref:      (d_in, d_pad) weights (resident, constant index map)
    # b_ref:      (1, d_pad)    bias, f32 (resident)
    # adj_ref:    (tm, tk)      weighted adjacency tile, adj[dst, src]
    # out_ref:    (tm, d_pad)   f32 output tile, resident across the j axis
    i = pl.program_id(0)
    j = pl.program_id(1)

    @pl.when(j == 0)
    def _init():
        out_ref[...] = jnp.zeros_like(out_ref)

    # Only the first counts[i] visits carry a real (nonzero) src block.
    @pl.when(j < counts_ref[i])
    def _step():
        # Linear for this src-node tile: H_k = X[k] @ W + b  (f32 accumulate)
        h = jnp.dot(x_ref[...], w_ref[...],
                    preferred_element_type=jnp.float32) + b_ref[...]
        # Weighted aggregation: OUT[i] += ADJ[i, k] @ H_k    (f32 accumulate)
        out_ref[...] += jnp.dot(adj_ref[...], h.astype(adj_ref.dtype),
                                preferred_element_type=jnp.float32)


# ----------------------------- wrapper ---------------------------------------

def gcn_conv_dgl(x, w, b, adj, *, tm=1024, tk=1024, compute_dtype=jnp.bfloat16):
    """Pallas forward of GCNConv_dgl.

    x:   [N, d_in]     float32 node features
    w:   [d_in, d_out] float32 (transpose of nn.Linear.weight)
    b:   [d_out]       float32
    adj: [N, N]        float32 dense weighted adjacency, adj[dst, src] = w_edge
    returns [N, d_out] float32
    """
    N, d_in = x.shape
    d_out = w.shape[1]
    assert adj.shape == (N, N)

    tm = min(tm, N)
    tk = min(tk, N)
    # Keep >= 2 dst-row tiles when possible so the 'parallel' axis can shard
    # across both TensorCores on megacore parts (v7x).
    if tm == N and N % 2 == 0 and (N // 2) % 8 == 0:
        tm = N // 2
    # TODO(synk): ragged N (not divisible by the tiles) needs zero-padding of
    # x / adj (numerically safe for this op); unsupported for now.
    assert N % tm == 0 and N % tk == 0, "N must be divisible by the tile sizes"

    n_i, n_k = N // tm, N // tk

    # ---- block-sparsity metadata (scalar prefetch) ---------------------------
    # For each dst tile i: counts[i] nonzero src k-blocks, their ids first in
    # kidx[i, :], tail padded with the last valid id (repeated index => the
    # pipeline re-uses the already-resident buffer, no extra HBM traffic).
    blk = adj.reshape(n_i, tm, n_k, tk)
    nz = jnp.any(blk != 0.0, axis=(1, 3))                                # (n_i, n_k)
    counts = jnp.sum(nz.astype(jnp.int32), axis=1)                       # (n_i,)
    sort_key = jnp.where(nz, jnp.arange(n_k)[None, :],
                         n_k + jnp.arange(n_k)[None, :])
    order = jnp.argsort(sort_key, axis=1).astype(jnp.int32)              # nonzero ids first
    last = jnp.take_along_axis(order, jnp.maximum(counts - 1, 0)[:, None], axis=1)
    kidx = jnp.where(jnp.arange(n_k)[None, :] < counts[:, None], order, last)
    kidx = kidx.reshape(-1).astype(jnp.int32)                            # (n_i * n_k,)

    # Lane-dense output: pad d_out to a multiple of 128 (full-width stores).
    d_pad = ((d_out + 127) // 128) * 128
    w_p = jnp.pad(w, ((0, 0), (0, d_pad - d_out))).astype(compute_dtype)
    b_p = jnp.pad(b, (0, d_pad - d_out)).reshape(1, d_pad).astype(jnp.float32)
    x_c = x.astype(compute_dtype)
    adj_c = adj.astype(compute_dtype)

    grid_spec = pltpu.PrefetchScalarGridSpec(
        num_scalar_prefetch=2,
        grid=(n_i, n_k),  # (dst-row tiles [parallel], src-block visits [reduction])
        in_specs=[
            # X tile gathered by the prefetched src-block id.
            pl.BlockSpec((tk, d_in), lambda i, j, cnt, kix: (kix[i * n_k + j], 0)),
            pl.BlockSpec((d_in, d_pad), lambda i, j, cnt, kix: (0, 0)),   # W resident
            pl.BlockSpec((1, d_pad), lambda i, j, cnt, kix: (0, 0)),      # b resident
            # ADJ tile gathered by the prefetched src-block id.
            pl.BlockSpec((tm, tk), lambda i, j, cnt, kix: (i, kix[i * n_k + j])),
        ],
        out_specs=pl.BlockSpec((tm, d_pad), lambda i, j, cnt, kix: (i, 0)),
    )

    out_p = pl.pallas_call(
        gcn_block_kernel,
        out_shape=jax.ShapeDtypeStruct((N, d_pad), jnp.float32),
        grid_spec=grid_spec,
        compiler_params=pltpu.CompilerParams(
            dimension_semantics=("parallel", "arbitrary"),
            vmem_limit_bytes=32 * 1024 * 1024,
        ),
    )(counts, kidx, x_c, w_p, b_p, adj_c)

    return out_p[:, :d_out]


# ----------------------------- reference -------------------------------------

def gcn_conv_dgl_ref(x, w, b, adj, compute_dtype=jnp.float32):
    """Reference. With compute_dtype=bf16 it mirrors the kernel's precision."""
    hp = jax.lax.Precision.HIGHEST
    xc, wc, ac = (t.astype(compute_dtype) for t in (x, w, adj))
    h = jnp.dot(xc, wc, preferred_element_type=jnp.float32, precision=hp) + b[None, :]
    return jnp.dot(ac, h.astype(compute_dtype),
                   preferred_element_type=jnp.float32, precision=hp)


# ----------------------------- main ------------------------------------------

if __name__ == "__main__":
    key = jax.random.PRNGKey(0)
    k_x, k_w, k_b, k_adj, k_mask = jax.random.split(key, 5)

    N = 512        # nodes
    D_IN = 64      # input features
    D_OUT = 32     # output features

    # node features
    x = jax.random.normal(k_x, (N, D_IN), dtype=jnp.float32)

    # nn.Linear(input_size, output_size) init: U(-1/sqrt(in), 1/sqrt(in))
    bound = 1.0 / (D_IN ** 0.5)
    w_linear = jax.random.uniform(
        k_w, (D_OUT, D_IN), minval=-bound, maxval=bound, dtype=jnp.float32
    )   # nn.Linear.weight shape [out, in]
    b_linear = jax.random.uniform(
        k_b, (D_OUT,), minval=-bound, maxval=bound, dtype=jnp.float32
    )
    w = w_linear.T  # [D_IN, D_OUT] for X @ W layout

    # synthetic weighted graph as dense adjacency: adj[dst, src] = edge weight
    edge_w = jax.random.uniform(k_adj, (N, N), dtype=jnp.float32)
    mask = (jax.random.uniform(k_mask, (N, N)) < 0.1).astype(jnp.float32)
    adj = edge_w * mask
    # Zero one quadrant so the small-tile run actually exercises the
    # empty-block skip path of the block-sparse indexing.
    adj = adj.at[: N // 2, N // 2:].set(0.0)

    ref_f32 = gcn_conv_dgl_ref(x, w, b_linear, adj)                  # pure f32 semantics
    ref_bf16 = gcn_conv_dgl_ref(x, w, b_linear, adj, jnp.bfloat16)   # kernel-precision ref

    # Default (large) tiles and small tiles (multi-block reduction + block skip).
    for tiles in ({}, {"tm": 128, "tk": 128}):
        out = gcn_conv_dgl(x, w, b_linear, adj, **tiles)
        out = jax.block_until_ready(out)
        assert out.shape == (N, D_OUT)
        assert jnp.allclose(out, ref_bf16, atol=2e-3, rtol=2e-3), \
            f"mismatch vs bf16 reference (tiles={tiles})"
        assert jnp.allclose(out, ref_f32, atol=2.5e-1, rtol=5e-2), \
            f"mismatch vs f32 reference (tiles={tiles})"

    print("KERNEL_OK")
</pallas_src>

<mosaic_0001>
module attributes {stable_mosaic.version = 11 : i64} {
  func.func @gcn_block_kernel(%arg0: i32, %arg1: i32, %arg2: memref<2xi32, #tpu.memory_space<smem>>, %arg3: memref<2xi32, #tpu.memory_space<smem>>, %arg4: memref<512x64xbf16, #tpu.memory_space<vmem>>, %arg5: memref<64x128xbf16, #tpu.memory_space<vmem>>, %arg6: memref<1x128xf32, #tpu.memory_space<vmem>>, %arg7: memref<256x512xbf16, #tpu.memory_space<vmem>>, %arg8: memref<256x128xf32, #tpu.memory_space<vmem>>) attributes {dimension_semantics = [#tpu.dimension_semantics<parallel>, #tpu.dimension_semantics<arbitrary>], iteration_bounds = array<i64: 2, 1>, scalar_prefetch = 2 : i64, scratch_operands = 0 : i64, tpu.core_type = #tpu.core_type<tc>, window_params = [{transform_indices = @transform_0, window_bounds = array<i64: 512, 64>}, {pipeline_mode = #tpu.pipeline_mode<synchronous>, transform_indices = @transform_1, window_bounds = array<i64: 64, 128>}, {pipeline_mode = #tpu.pipeline_mode<synchronous>, transform_indices = @transform_2, window_bounds = array<i64: 1, 128>}, {transform_indices = @transform_3, window_bounds = array<i64: 256, 512>}, {transform_indices = @transform_4, window_bounds = array<i64: 256, 128>}]} {
    %c0_i32 = arith.constant 0 : i32
    %0 = arith.cmpi eq, %arg1, %c0_i32 : i32
    %1 = arith.extui %0 : i1 to i32
    %c0_i32_0 = arith.constant 0 : i32
    %2 = arith.cmpi ne, %1, %c0_i32_0 : i32
    scf.if %2 {
      %cst = arith.constant 0.000000e+00 : f32
      %8 = vector.broadcast %cst : f32 to vector<256x128xf32>
      %c0 = arith.constant 0 : index
      %c0_2 = arith.constant 0 : index
      %9 = vector.load %arg8[%c0, %c0_2] : memref<256x128xf32, #tpu.memory_space<vmem>>, vector<256x128xf32>
      tpu.vector_store %arg8[%c0, %c0_2], %8 {strides = array<i32>} : memref<256x128xf32, #tpu.memory_space<vmem>>, vector<256x128xf32>,
    } else {
    }
    %3 = arith.index_cast %arg0 : i32 to index
    %4 = memref.load %arg2[%3] : memref<2xi32, #tpu.memory_space<smem>>
    %5 = arith.cmpi slt, %arg1, %4 : i32
    %6 = arith.extui %5 : i1 to i32
    %c0_i32_1 = arith.constant 0 : i32
    %7 = arith.cmpi ne, %6, %c0_i32_1 : i32
    scf.if %7 {
      %c0 = arith.constant 0 : index
      %c0_2 = arith.constant 0 : index
      %8 = vector.load %arg4[%c0, %c0_2] : memref<512x64xbf16, #tpu.memory_space<vmem>>, vector<512x64xbf16>
      %c0_3 = arith.constant 0 : index
      %c0_4 = arith.constant 0 : index
      %9 = vector.load %arg5[%c0_3, %c0_4] : memref<64x128xbf16, #tpu.memory_space<vmem>>, vector<64x128xbf16>
      %cst = arith.constant dense<0.000000e+00> : vector<512x128xf32>
      %10 = tpu.matmul %8, %9, %cst {dimension_numbers = #tpu.dot_dimension_numbers<[1], [0], [0], [1], [0, 0, 1, 1], [], []>} : vector<512x64xbf16>, vector<64x128xbf16>, vector<512x128xf32> -> vector<512x128xf32>
      %c0_5 = arith.constant 0 : index
      %c0_6 = arith.constant 0 : index
      %11 = vector.load %arg6[%c0_5, %c0_6] : memref<1x128xf32, #tpu.memory_space<vmem>>, vector<1x128xf32>
      %12 = vector.broadcast %11 : vector<1x128xf32> to vector<512x128xf32>
      %13 = arith.addf %10, %12 : vector<512x128xf32>
      %c0_7 = arith.constant 0 : index
      %c0_8 = arith.constant 0 : index
      %14 = vector.load %arg8[%c0_7, %c0_8] : memref<256x128xf32, #tpu.memory_space<vmem>>, vector<256x128xf32>
      %c0_9 = arith.constant 0 : index
      %c0_10 = arith.constant 0 : index
      %15 = vector.load %arg7[%c0_9, %c0_10] : memref<256x512xbf16, #tpu.memory_space<vmem>>, vector<256x512xbf16>
      %16 = arith.truncf %13 : vector<512x128xf32> to vector<512x128xbf16>
      %cst_11 = arith.constant dense<0.000000e+00> : vector<256x128xf32>
      %17 = tpu.matmul %15, %16, %cst_11 {dimension_numbers = #tpu.dot_dimension_numbers<[1], [0], [0], [1], [0, 0, 1, 1], [], []>} : vector<256x512xbf16>, vector<512x128xbf16>, vector<256x128xf32> -> vector<256x128xf32>
      %18 = arith.addf %14, %17 : vector<256x128xf32>
      %c0_12 = arith.constant 0 : index
      %c0_13 = arith.constant 0 : index
      %19 = vector.load %arg8[%c0_12, %c0_13] : memref<256x128xf32, #tpu.memory_space<vmem>>, vector<256x128xf32>
      tpu.vector_store %arg8[%c0_12, %c0_13], %18 {strides = array<i32>} : memref<256x128xf32, #tpu.memory_space<vmem>>, vector<256x128xf32>,
    } else {
    }
    return
  }
  func.func @transform_0(%arg0: i32, %arg1: i32, %arg2: memref<2xi32, #tpu.memory_space<smem>>, %arg3: memref<2xi32, #tpu.memory_space<smem>>) -> (i32, i32) {
    %c1_i32 = arith.constant 1 : i32
    %0 = arith.muli %arg0, %c1_i32 : i32
    %1 = arith.addi %0, %arg1 : i32
    %2 = arith.index_cast %1 : i32 to index
    %3 = memref.load %arg3[%2] : memref<2xi32, #tpu.memory_space<smem>>
    %c0_i32 = arith.constant 0 : i32
    %c0_i32_0 = arith.constant 0 : i32
    return %3, %c0_i32 : i32, i32
  }
  func.func @transform_1(%arg0: i32, %arg1: i32, %arg2: memref<2xi32, #tpu.memory_space<smem>>, %arg3: memref<2xi32, #tpu.memory_space<smem>>) -> (i32, i32) {
    %c0_i32 = arith.constant 0 : i32
    %c0_i32_0 = arith.constant 0 : i32
    %c0_i32_1 = arith.constant 0 : i32
    return %c0_i32, %c0_i32_0 : i32, i32
  }
  func.func @transform_2(%arg0: i32, %arg1: i32, %arg2: memref<2xi32, #tpu.memory_space<smem>>, %arg3: memref<2xi32, #tpu.memory_space<smem>>) -> (i32, i32) {
    %c0_i32 = arith.constant 0 : i32
    %c0_i32_0 = arith.constant 0 : i32
    %c0_i32_1 = arith.constant 0 : i32
    return %c0_i32, %c0_i32_0 : i32, i32
  }
  func.func @transform_3(%arg0: i32, %arg1: i32, %arg2: memref<2xi32, #tpu.memory_space<smem>>, %arg3: memref<2xi32, #tpu.memory_space<smem>>) -> (i32, i32) {
    %c1_i32 = arith.constant 1 : i32
    %0 = arith.muli %arg0, %c1_i32 : i32
    %1 = arith.addi %0, %arg1 : i32
    %2 = arith.index_cast %1 : i32 to index
    %3 = memref.load %arg3[%2] : memref<2xi32, #tpu.memory_space<smem>>
    %c0_i32 = arith.constant 0 : i32
    return %arg0, %3 : i32, i32
  }
  func.func @transform_4(%arg0: i32, %arg1: i32, %arg2: memref<2xi32, #tpu.memory_space<smem>>, %arg3: memref<2xi32, #tpu.memory_space<smem>>) -> (i32, i32) {
    %c0_i32 = arith.constant 0 : i32
    %c0_i32_0 = arith.constant 0 : i32
    return %arg0, %c0_i32 : i32, i32
  }
}

</mosaic_0001>

<llo_original>
// kernel: tpu_custom_call.1
$region0: #{tpu_custom_call.1}
  #allocation0 [shape = 'u32[]', space=smem, size = 0x4, offset = 0x4, fixed_abs, tag = 'smem constant byte address 0x4 - core index']
  #allocation1 [shape = 'u32[144,128]{1,0:T(1,128)}', space=vmem, size = 0x12000, scoped, tag = 'internal scratch']
  #allocation2 [shape = 's32[1]{0}', space=sflag, size = 0x4, scoped, tag = 'scoped memory for tpu_custom_call.1']
  #allocation3 [shape = 'u8[512]{0}', space=smem, size = 0x200, scoped, tag = 'prefetched SMEM operand 0']
  #allocation4 [shape = 'u8[512]{0}', space=smem, size = 0x200, scoped, tag = 'prefetched SMEM operand 1']
  %s0 = inlined_call_operand.vmem [shape: s32[2], index: 0, kind: input, shape index: {}]
  %s1 = inlined_call_operand.vmem [shape: s32[2], index: 1, kind: input, shape index: {}]
  %s2 = inlined_call_operand.vmem [shape: bf16[512,64], index: 2, kind: input, shape index: {}]
  %s3 = inlined_call_operand.vmem [shape: bf16[64,128], index: 3, kind: input, shape index: {}]
  %s4 = inlined_call_operand.vmem [shape: f32[1,128], index: 4, kind: input, shape index: {}]
  %s5 = inlined_call_operand.hbm [shape: bf16[512,512], index: 5, kind: input, shape index: {}]
  %s6 = inlined_call_operand.hbm [shape: f32[512,128], index: 6, kind: output, shape index: {}]
  %s7 = sld [smem:[#allocation0]]
  $region61: #{tpu_custom_call.1} parent=0
    _
  %s9 = ssub.s32 1, %s7
  %s10 = scalar_select 0, %s9, %s7
  %s11 = sshll.u32 %s0, 4
  %s12 = int_to_ptr.vmem [resolvable:$true] %s11
  %14 = dma.vmem_to_smem %s12, 16, [#allocation3], [#allocation2]
  %s15 = sshll.u32 %s1, 4
  %s16 = int_to_ptr.vmem [resolvable:$true] %s15
  %18 = dma.vmem_to_smem %s16, 16, [#allocation4], [#allocation2]
  %19 = dma.done [#allocation2], 32
  %20 = sfence
  $region1: #{tpu_custom_call.1} parent=0
    #allocation5 [shape = 'u8[524288]{0}', space=vmem, size = 0x80000, scoped, tag = 'input window, operand 5']
    #allocation6 [shape = 's32[2]{0}', space=sflag, size = 0x8, scoped, tag = 'scoped memory for tpu_custom_call.1']
    #allocation7 [shape = 's32[2]{0}', space=sflag, size = 0x8, scoped, tag = 'scoped memory for tpu_custom_call.1']
    #allocation8 [shape = 'u8[262144]{0}', space=vmem, size = 0x40000, scoped, tag = 'output window, operand 0']
    %21 = vsyncpa [#allocation6], 0
    %s22 = scalar_lea.sflag [#allocation6], 1
    %23 = vsyncpa %s22, 0
    %24 = vsyncpa [#allocation7], 0
    %s25 = scalar_lea.sflag [#allocation7], 1
    %26 = vsyncpa %s25, 0
    loop: start=0, step=1, limit=4
    $region2: #{tpu_custom_call.1} parent=1 // loop_pre_header
      _
    $region3: #{tpu_custom_call.1} parent=1 // loop_header
      %s28 = sphi 0, %s32
      %p29 = scmp.ge.s32.totalorder %s28, 4
      %s35 = sphi 0, %s47
      %s36 = sphi 0, %s43
      %s37 = sphi 0, %s35
      %s38 = sphi 0, %s36
      %s39 = sphi 0, %s37
      %s40 = sphi 0, %s38
      %s54 = sphi 0, %s56
      %s57 = sphi 0, %s54
      %s58 = sphi 0, %s57
      %s74 = sphi 0, %s58
      %s78 = sphi 0, %s78
      %s80 = sphi 0, %s78
      %s81 = sphi 0, %s80
      %s95 = sphi 0, %s81
      %s99 = sphi 0, %s99
      %s101 = sphi 0, %s99
      %s102 = sphi 0, %s101
      %s116 = sphi 0, %s102
      %s128 = sphi 0, %s130
      %s131 = sphi 0, %s128
      %s132 = sphi 0, %s131
      %s148 = sphi 0, %s132
      %s154 = sphi 0, %s156
      %s157 = sphi 0, %s154
      %s158 = sphi 0, %s157
      %s174 = sphi 0, %s158
    $region4: #{tpu_custom_call.1} parent=1 // loop_header_branch
      %31 = sbr.rel (%p29) target = $region8
    $region5: #{tpu_custom_call.1} parent=1 // loop_body
      %s33 = ssub.s32 %s28, 1
      %s34 = ssub.s32 %s28, 2
      %s41 = sadd.s32 1, %s36
      %p42 = scmp.ge.s32.totalorder %s41, 1
      %s43 = scalar_select %p42, 0, %s41
      %s44 = sadd.s32 1, %s35
      %s45 = scalar_select %p42, %s44, %s35
      %p46 = scmp.ge.s32.totalorder %s45, 2
      %s47 = scalar_select %p46, 0, %s45
      %s48 = sadd.s32 %s35, %s36
      %s49 = sld [smem:[#allocation4 + %s48]]
      %s50 = sadd.s32 %s47, %s43
      %s51 = sld [smem:[#allocation4 + %s50]]
      %s52 = ssub.s32 %s49, %s51
      %p53 = scmp.eq.s32.totalorder %s52, 0
      %s55 = sadd.s32 %s54, 1
      %s56 = scalar_select %p53, %s54, %s55
      %p59 = pneg %p53
      %p60 = scmp.eq.s32.totalorder %s28, 1
      %p61 = por %p59, %p60
      %p62 = scmp.ne.s32.totalorder %s54, %s57
      %p63 = scmp.eq.s32.totalorder %s28, 0
      %p64 = por %p62, %p63
      %p65 = scmp.ne.s32.totalorder %s54, %s57
      %p66 = scmp.eq.s32.totalorder %s33, 1
      %p67 = por %p65, %p66
      %p68 = scmp.ne.s32.totalorder %s57, %s58
      %p69 = scmp.eq.s32.totalorder %s33, 0
      %p70 = por %p68, %p69
      %p71 = scmp.ne.s32.totalorder %s57, %s58
      %p72 = scmp.eq.s32.totalorder %s34, 1
      %p73 = por %p71, %p72
      %p75 = scmp.ne.s32.totalorder %s58, %s74
      %p76 = scmp.eq.s32.totalorder %s34, 0
      %p77 = por %p75, %p76
      %s79 = sadd.s32 %s78, 1
      %p82 = scmp.eq.s32.totalorder %s28, 1
      %p83 = scmp.ne.s32.totalorder %s78, %s80
      %p84 = scmp.eq.s32.totalorder %s28, 0
      %p85 = por %p83, %p84
      %p86 = scmp.ne.s32.totalorder %s78, %s80
      %p87 = scmp.eq.s32.totalorder %s33, 1
      %p88 = por %p86, %p87
      %p89 = scmp.ne.s32.totalorder %s80, %s81
      %p90 = scmp.eq.s32.totalorder %s33, 0
      %p91 = por %p89, %p90
      %p92 = scmp.ne.s32.totalorder %s80, %s81
      %p93 = scmp.eq.s32.totalorder %s34, 1
      %p94 = por %p92, %p93
      %p96 = scmp.ne.s32.totalorder %s81, %s95
      %p97 = scmp.eq.s32.totalorder %s34, 0
      %p98 = por %p96, %p97
      %s100 = sadd.s32 %s99, 1
      %p103 = scmp.eq.s32.totalorder %s28, 1
      %p104 = scmp.ne.s32.totalorder %s99, %s101
      %p105 = scmp.eq.s32.totalorder %s28, 0
      %p106 = por %p104, %p105
      %p107 = scmp.ne.s32.totalorder %s99, %s101
      %p108 = scmp.eq.s32.totalorder %s33, 1
      %p109 = por %p107, %p108
      %p110 = scmp.ne.s32.totalorder %s101, %s102
      %p111 = scmp.eq.s32.totalorder %s33, 0
      %p112 = por %p110, %p111
      %p113 = scmp.ne.s32.totalorder %s101, %s102
      %p114 = scmp.eq.s32.totalorder %s34, 1
      %p115 = por %p113, %p114
      %p117 = scmp.ne.s32.totalorder %s102, %s116
      %p118 = scmp.eq.s32.totalorder %s34, 0
      %p119 = por %p117, %p118
      %s120 = sadd.s32 %s35, %s36
      %s121 = sld [smem:[#allocation4 + %s120]]
      %s122 = sadd.s32 %s47, %s43
      %s123 = sld [smem:[#allocation4 + %s122]]
      %s124 = ssub.s32 %s35, %s47
      %s125 = ssub.s32 %s121, %s123
      %s126 = sor.u32 %s124, %s125
      %p127 = scmp.eq.s32.totalorder %s126, 0
      %s129 = sadd.s32 %s128, 1
      %s130 = scalar_select %p127, %s128, %s129
      %p133 = pneg %p127
      %p134 = scmp.eq.s32.totalorder %s28, 1
      %p135 = por %p133, %p134
      %p136 = scmp.ne.s32.totalorder %s128, %s131
      %p137 = scmp.eq.s32.totalorder %s28, 0
      %p138 = por %p136, %p137
      %p139 = scmp.ne.s32.totalorder %s128, %s131
      %p140 = scmp.eq.s32.totalorder %s33, 1
      %p141 = por %p139, %p140
      %p142 = scmp.ne.s32.totalorder %s131, %s132
      %p143 = scmp.eq.s32.totalorder %s33, 0
      %p144 = por %p142, %p143
      %p145 = scmp.ne.s32.totalorder %s131, %s132
      %p146 = scmp.eq.s32.totalorder %s34, 1
      %p147 = por %p145, %p146
      %p149 = scmp.ne.s32.totalorder %s132, %s148
      %p150 = scmp.eq.s32.totalorder %s34, 0
      %p151 = por %p149, %p150
      %s152 = ssub.s32 %s35, %s47
      %p153 = scmp.eq.s32.totalorder %s152, 0
      %s155 = sadd.s32 %s154, 1
      %s156 = scalar_select %p153, %s154, %s155
      %p159 = pneg %p153
      %p160 = scmp.eq.s32.totalorder %s28, 1
      %p161 = por %p159, %p160
      %p162 = scmp.ne.s32.totalorder %s154, %s157
      %p163 = scmp.eq.s32.totalorder %s28, 0
      %p164 = por %p162, %p163
      %p165 = scmp.ne.s32.totalorder %s154, %s157
      %p166 = scmp.eq.s32.totalorder %s33, 1
      %p167 = por %p165, %p166
      %p168 = scmp.ne.s32.totalorder %s157, %s158
      %p169 = scmp.eq.s32.totalorder %s33, 0
      %p170 = por %p168, %p169
      %p171 = scmp.ne.s32.totalorder %s157, %s158
      %p172 = scmp.eq.s32.totalorder %s34, 1
      %p173 = por %p171, %p172
      %p175 = scmp.ne.s32.totalorder %s158, %s174
      %p176 = scmp.eq.s32.totalorder %s34, 0
      %p177 = por %p175, %p176
      %p178 = scmp.le.s32.totalorder 1, %s28
      %p179 = scmp.lt.s32.totalorder %s28, 3
      %p180 = pnand %p178, %p179
      %p181 = pneg %p180
      // Predicated region
      $region9: #{tpu_custom_call.1} parent=5 // pred_check
        _
      $region10: #{tpu_custom_call.1} parent=5 // pred_check_branch
        %183 = sbr.rel (%p180) target = $region12
      $region11: #{tpu_custom_call.1} parent=5 // pred_region
        %s184 = ssub.s32 %s28, 1
        // Predicated region
        $region13: #{tpu_custom_call.1} parent=11 // pred_check
          %p185 = pneg %p91
        $region14: #{tpu_custom_call.1} parent=11 // pred_check_branch
          %187 = sbr.rel (%p185) target = $region16
        $region15: #{tpu_custom_call.1} parent=11 // pred_region
          _
        $region16: #{tpu_custom_call.1} parent=11 // pred_fallthru
          _
        // Predicated region
        $region17: #{tpu_custom_call.1} parent=11 // pred_check
          %p188 = pneg %p112
        $region18: #{tpu_custom_call.1} parent=11 // pred_check_branch
          %190 = sbr.rel (%p188) target = $region20
        $region19: #{tpu_custom_call.1} parent=11 // pred_region
          _
        $region20: #{tpu_custom_call.1} parent=11 // pred_fallthru
          _
      $region12: #{tpu_custom_call.1} parent=5 // pred_fallthru
        _
      %p191 = scmp.lt.s32.totalorder %s28, 2
      // Predicated region
      $region21: #{tpu_custom_call.1} parent=5 // pred_check
        %p192 = pneg %p191
      $region22: #{tpu_custom_call.1} parent=5 // pred_check_branch
        %194 = sbr.rel (%p192) target = $region24
      $region23: #{tpu_custom_call.1} parent=5 // pred_region
        // Predicated region
        $region25: #{tpu_custom_call.1} parent=23 // pred_check
          %p195 = pneg %p64
        $region26: #{tpu_custom_call.1} parent=23 // pred_check_branch
          %197 = sbr.rel (%p195) target = $region28
        $region27: #{tpu_custom_call.1} parent=23 // pred_region
          %s198 = sadd.s32 %s35, %s36
          %s199 = sld [smem:[#allocation4 + %s198]]
          %s200 = smul.u32 64, %s199
          %p201 = scmp.lt.s32.totalorder %s200, 63
          %s202 = scalar_select %p201, %s200, 63
          %s203 = smul.addr %s202, 4
          %s204 = scalar_lea.vmem %s2, %s203
          %s205 = sadd.s32 %s35, %s36
          %s206 = sld [smem:[#allocation4 + %s205]]
          %s207 = smul.u32 64, %s206
        $region28: #{tpu_custom_call.1} parent=23 // pred_fallthru
          _
        // Predicated region
        $region29: #{tpu_custom_call.1} parent=23 // pred_check
          %p208 = pneg %p138
        $region30: #{tpu_custom_call.1} parent=23 // pred_check_branch
          %210 = sbr.rel (%p208) target = $region32
        $region31: #{tpu_custom_call.1} parent=23 // pred_region
          %s211 = sand.u32 %s128, 1
          %s212 = scalar_lea.sflag [#allocation6], %s211
          %s213 = sand.u32 %s128, 1
          %s214 = smul.addr %s213, 512
          %s215 = scalar_lea.vmem [#allocation5], %s214
          %s216 = sadd.s32 %s35, %s36
          %s217 = sld [smem:[#allocation4 + %s216]]
          %s218 = smul.u32 32, %s35
          %s219 = smul.u32 4, %s217
          %s221 = ssub.s32 8192, 8192
          %222 = vsyncadd %s212, %s221
          %s223 = smul.addr %s218, 4
          %s224 = sadd.s32 %s219, %s223
          %s225 = smul.addr %s224, 64
          %s226 = scalar_lea.hbm %s5, %s225
          %s227 = sshll.u32 %s215, 4
          %s228 = int_to_ptr.vmem [resolvable:$true] %s227
          %233 = dma.hbm_to_vmem [thread:$0]  %s226, 8192, %s228, %s212, 256, 256, 16
        $region32: #{tpu_custom_call.1} parent=23 // pred_fallthru
          _
      $region24: #{tpu_custom_call.1} parent=5 // pred_fallthru
        _
      %p234 = scmp.le.s32.totalorder 1, %s28
      %p235 = scmp.lt.s32.totalorder %s28, 3
      %p236 = pnand %p234, %p235
      %p237 = pneg %p236
      // Predicated region
      $region33: #{tpu_custom_call.1} parent=5 // pred_check
        _
      $region34: #{tpu_custom_call.1} parent=5 // pred_check_branch
        %239 = sbr.rel (%p236) target = $region36
      $region35: #{tpu_custom_call.1} parent=5 // pred_region
        %s240 = ssub.s32 %s28, 1
        %s241 = sand.u32 %s131, 1
        %s242 = scalar_lea.sflag [#allocation6], %s241
        %s243 = sand.u32 %s131, 1
        %s244 = smul.addr %s243, 512
        %s245 = scalar_lea.vmem [#allocation5], %s244
        // Predicated region
        $region37: #{tpu_custom_call.1} parent=35 // pred_check
          %p246 = pneg %p144
        $region38: #{tpu_custom_call.1} parent=35 // pred_check_branch
          %248 = sbr.rel (%p246) target = $region40
        $region39: #{tpu_custom_call.1} parent=35 // pred_region
          %249 = dma.done %s242, 8192
        $region40: #{tpu_custom_call.1} parent=35 // pred_fallthru
          _
        %s250 = sadd.s32 %s37, %s38
        %s251 = sld [smem:[#allocation4 + %s250]]
        %s252 = smul.u32 64, %s251
        %p253 = scmp.lt.s32.totalorder %s252, 63
        %s254 = scalar_select %p253, %s252, 63
        %s255 = smul.addr %s254, 4
        %s256 = scalar_lea.vmem %s2, %s255
        %p257 = pneg %p70
        %p258 = pneg %p67
        %p259 = pneg %p91
        %p260 = pneg %p88
        %p261 = pneg %p112
        %p262 = pneg %p109
        %s263 = sand.u32 %s131, 1
        %s264 = scalar_lea.sflag [#allocation6], %s263
        %s265 = sand.u32 %s131, 1
        %s266 = smul.addr %s265, 512
        %s267 = scalar_lea.vmem [#allocation5], %s266
        %p268 = pneg %p144
        %p269 = pneg %p141
        %p270 = pneg %p170
        %p271 = pneg %p167
        %s272 = sand.u32 %s157, 1
        %s273 = scalar_lea.sflag [#allocation7], %s272
        %s274 = sand.u32 %s157, 1
        %s275 = smul.addr %s274, 256
        %s276 = scalar_lea.vmem [#allocation8], %s275
        %s277 = sadd.s32 %s37, %s38
        %s278 = sld [smem:[#allocation4 + %s277]]
        %s279 = smul.u32 64, %s278
        %p280 = scmp.lt.s32.totalorder %s279, 63
        %s281 = scalar_select %p280, %s279, 63
        %s282 = smul.addr %s281, 4
        %s283 = scalar_lea.vmem %s2, %s282
        %s284 = sadd.s32 %s37, %s38
        %s285 = sld [smem:[#allocation4 + %s284]]
        %s286 = smul.u32 64, %s285
        %s287 = sadd.s32 %s37, %s38
        %s288 = sld [smem:[#allocation4 + %s287]]
        %s289 = smul.u32 32, %s37
        %s290 = smul.u32 4, %s288
        %s291 = smul.u32 32, %s37
        %p293 = scmp.eq.s32.totalorder %s38, 0
        // Predicated region
        $region41: #{tpu_custom_call.1} parent=35 // pred_check
          %p294 = pneg %p293
        $region42: #{tpu_custom_call.1} parent=35 // pred_check_branch
          %296 = sbr.rel (%p294) target = $region44
        $region43: #{tpu_custom_call.1} parent=35 // pred_region
          %297 = vst [vmem:[%s276] sm:$0xff] 0.0
          %298 = vst [vmem:[%s276 + $0x8] sm:$0xff] 0.0
          %299 = vst [vmem:[%s276 + $0x10] sm:$0xff] 0.0
          %300 = vst [vmem:[%s276 + $0x18] sm:$0xff] 0.0
          %301 = vst [vmem:[%s276 + $0x20] sm:$0xff] 0.0
          %302 = vst [vmem:[%s276 + $0x28] sm:$0xff] 0.0
          %303 = vst [vmem:[%s276 + $0x30] sm:$0xff] 0.0
          %304 = vst [vmem:[%s276 + $0x38] sm:$0xff] 0.0
          %305 = vst [vmem:[%s276 + $0x40] sm:$0xff] 0.0
          %306 = vst [vmem:[%s276 + $0x48] sm:$0xff] 0.0
          %307 = vst [vmem:[%s276 + $0x50] sm:$0xff] 0.0
          %308 = vst [vmem:[%s276 + $0x58] sm:$0xff] 0.0
          %309 = vst [vmem:[%s276 + $0x60] sm:$0xff] 0.0
          %310 = vst [vmem:[%s276 + $0x68] sm:$0xff] 0.0
          %311 = vst [vmem:[%s276 + $0x70] sm:$0xff] 0.0
          %312 = vst [vmem:[%s276 + $0x78] sm:$0xff] 0.0
          %313 = vst [vmem:[%s276 + $0x80] sm:$0xff] 0.0
          %314 = vst [vmem:[%s276 + $0x88] sm:$0xff] 0.0
          %315 = vst [vmem:[%s276 + $0x90] sm:$0xff] 0.0
          %316 = vst [vmem:[%s276 + $0x98] sm:$0xff] 0.0
          %317 = vst [vmem:[%s276 + $0xa0] sm:$0xff] 0.0
          %318 = vst [vmem:[%s276 + $0xa8] sm:$0xff] 0.0
          %319 = vst [vmem:[%s276 + $0xb0] sm:$0xff] 0.0
          %320 = vst [vmem:[%s276 + $0xb8] sm:$0xff] 0.0
          %321 = vst [vmem:[%s276 + $0xc0] sm:$0xff] 0.0
          %322 = vst [vmem:[%s276 + $0xc8] sm:$0xff] 0.0
          %323 = vst [vmem:[%s276 + $0xd0] sm:$0xff] 0.0
          %324 = vst [vmem:[%s276 + $0xd8] sm:$0xff] 0.0
          %325 = vst [vmem:[%s276 + $0xe0] sm:$0xff] 0.0
          %326 = vst [vmem:[%s276 + $0xe8] sm:$0xff] 0.0
          %327 = vst [vmem:[%s276 + $0xf0] sm:$0xff] 0.0
          %328 = vst [vmem:[%s276 + $0xf8] sm:$0xff] 0.0
        $region44: #{tpu_custom_call.1} parent=35 // pred_fallthru
          _
        %s329 = sld [smem:[#allocation3 + %s37]]
        %p330 = scmp.lt.s32.totalorder %s38, %s329
        // Predicated region
        $region45: #{tpu_custom_call.1} parent=35 // pred_check
          %p331 = pneg %p330
        $region46: #{tpu_custom_call.1} parent=35 // pred_check_branch
          %333 = sbr.rel (%p331) target = $region48
        $region47: #{tpu_custom_call.1} parent=35 // pred_region
          %v334 = vld [vmem:[%s283] sm:$0xf]
          %v335 = vld [vmem:[%s283 + $0x4] sm:$0xf]
          %v336 = vld [vmem:[%s283 + $0x8] sm:$0xf]
          %v337 = vld [vmem:[%s283 + $0xc] sm:$0xf]
          %v338 = vld [vmem:[%s283 + $0x10] sm:$0xf]
          %v339 = vld [vmem:[%s283 + $0x14] sm:$0xf]
          %v340 = vld [vmem:[%s283 + $0x18] sm:$0xf]
          %v341 = vld [vmem:[%s283 + $0x1c] sm:$0xf]
          %v342 = vld [vmem:[%s283 + $0x20] sm:$0xf]
          %v343 = vld [vmem:[%s283 + $0x24] sm:$0xf]
          %v344 = vld [vmem:[%s283 + $0x28] sm:$0xf]
          %v345 = vld [vmem:[%s283 + $0x2c] sm:$0xf]
          %v346 = vld [vmem:[%s283 + $0x30] sm:$0xf]
          %v347 = vld [vmem:[%s283 + $0x34] sm:$0xf]
          %v348 = vld [vmem:[%s283 + $0x38] sm:$0xf]
          %v349 = vld [vmem:[%s283 + $0x3c] sm:$0xf]
          %v350 = vld [vmem:[%s283 + $0x40] sm:$0xf]
          %v351 = vld [vmem:[%s283 + $0x44] sm:$0xf]
          %v352 = vld [vmem:[%s283 + $0x48] sm:$0xf]
          %v353 = vld [vmem:[%s283 + $0x4c] sm:$0xf]
          %v354 = vld [vmem:[%s283 + $0x50] sm:$0xf]
          %v355 = vld [vmem:[%s283 + $0x54] sm:$0xf]
          %v356 = vld [vmem:[%s283 + $0x58] sm:$0xf]
          %v357 = vld [vmem:[%s283 + $0x5c] sm:$0xf]
          %v358 = vld [vmem:[%s283 + $0x60] sm:$0xf]
          %v359 = vld [vmem:[%s283 + $0x64] sm:$0xf]
          %v360 = vld [vmem:[%s283 + $0x68] sm:$0xf]
          %v361 = vld [vmem:[%s283 + $0x6c] sm:$0xf]
          %v362 = vld [vmem:[%s283 + $0x70] sm:$0xf]
          %v363 = vld [vmem:[%s283 + $0x74] sm:$0xf]
          %v364 = vld [vmem:[%s283 + $0x78] sm:$0xf]
          %v365 = vld [vmem:[%s283 + $0x7c] sm:$0xf]
          %v366 = vld [vmem:[%s283 + $0x80] sm:$0xf]
          %v367 = vld [vmem:[%s283 + $0x84] sm:$0xf]
          %v368 = vld [vmem:[%s283 + $0x88] sm:$0xf]
          %v369 = vld [vmem:[%s283 + $0x8c] sm:$0xf]
          %v370 = vld [vmem:[%s283 + $0x90] sm:$0xf]
          %v371 = vld [vmem:[%s283 + $0x94] sm:$0xf]
          %v372 = vld [vmem:[%s283 + $0x98] sm:$0xf]
          %v373 = vld [vmem:[%s283 + $0x9c] sm:$0xf]
          %v374 = vld [vmem:[%s283 + $0xa0] sm:$0xf]
          %v375 = vld [vmem:[%s283 + $0xa4] sm:$0xf]
          %v376 = vld [vmem:[%s283 + $0xa8] sm:$0xf]
          %v377 = vld [vmem:[%s283 + $0xac] sm:$0xf]
          %v378 = vld [vmem:[%s283 + $0xb0] sm:$0xf]
          %v379 = vld [vmem:[%s283 + $0xb4] sm:$0xf]
          %v380 = vld [vmem:[%s283 + $0xb8] sm:$0xf]
          %v381 = vld [vmem:[%s283 + $0xbc] sm:$0xf]
          %v382 = vld [vmem:[%s283 + $0xc0] sm:$0xf]
          %v383 = vld [vmem:[%s283 + $0xc4] sm:$0xf]
          %v384 = vld [vmem:[%s283 + $0xc8] sm:$0xf]
          %v385 = vld [vmem:[%s283 + $0xcc] sm:$0xf]
          %v386 = vld [vmem:[%s283 + $0xd0] sm:$0xf]
          %v387 = vld [vmem:[%s283 + $0xd4] sm:$0xf]
          %v388 = vld [vmem:[%s283 + $0xd8] sm:$0xf]
          %v389 = vld [vmem:[%s283 + $0xdc] sm:$0xf]
          %v390 = vld [vmem:[%s283 + $0xe0] sm:$0xf]
          %v391 = vld [vmem:[%s283 + $0xe4] sm:$0xf]
          %v392 = vld [vmem:[%s283 + $0xe8] sm:$0xf]
          %v393 = vld [vmem:[%s283 + $0xec] sm:$0xf]
          %v394 = vld [vmem:[%s283 + $0xf0] sm:$0xf]
          %v395 = vld [vmem:[%s283 + $0xf4] sm:$0xf]
          %v396 = vld [vmem:[%s283 + $0xf8] sm:$0xf]
          %v397 = vld [vmem:[%s283 + $0xfc] sm:$0xf]
          %v398 = vld [vmem:[%s3] sm:$0xf]
          %v399 = vld [vmem:[%s3 + $0x4] sm:$0xf]
          %v400 = vld [vmem:[%s3 + $0x8] sm:$0xf]
          %v401 = vld [vmem:[%s3 + $0xc] sm:$0xf]
          %v402 = vld [vmem:[%s3 + $0x10] sm:$0xf]
          %v403 = vld [vmem:[%s3 + $0x14] sm:$0xf]
          %v404 = vld [vmem:[%s3 + $0x18] sm:$0xf]
          %v405 = vld [vmem:[%s3 + $0x1c] sm:$0xf]
          %v406 = vld [vmem:[%s4] sm:$0x1]
          %v408 = vlaneseq
          %v409 = vshrl.u32 %v408, 7
          %v410 = vsub.s32 0, %v409
          %v411 = vrot.slane %v406, %v410
          %v477 = vunpack.c.l.b16 %v334
          %v478 = vunpack.c.l.b16 %v335
          %v479 = vunpack.c.l.b16 %v336
          %v480 = vunpack.c.l.b16 %v337
          %v481 = vunpack.c.l.b16 %v338
          %v482 = vunpack.c.l.b16 %v339
          %v483 = vunpack.c.l.b16 %v340
          %v484 = vunpack.c.l.b16 %v341
          %v485 = vunpack.c.l.b16 %v342
          %v486 = vunpack.c.l.b16 %v343
          %v487 = vunpack.c.l.b16 %v344
          %v488 = vunpack.c.l.b16 %v345
          %v489 = vunpack.c.l.b16 %v346
          %v490 = vunpack.c.l.b16 %v347
          %v491 = vunpack.c.l.b16 %v348
          %v492 = vunpack.c.l.b16 %v349
          %v493 = vunpack.c.l.b16 %v350
          %v494 = vunpack.c.l.b16 %v351
          %v495 = vunpack.c.l.b16 %v352
          %v496 = vunpack.c.l.b16 %v353
          %v497 = vunpack.c.l.b16 %v354
          %v498 = vunpack.c.l.b16 %v355
          %v499 = vunpack.c.l.b16 %v356
          %v500 = vunpack.c.l.b16 %v357
          %v501 = vunpack.c.l.b16 %v358
          %v502 = vunpack.c.l.b16 %v359
          %v503 = vunpack.c.l.b16 %v360
          %v504 = vunpack.c.l.b16 %v361
          %v505 = vunpack.c.l.b16 %v362
          %v506 = vunpack.c.l.b16 %v363
          %v507 = vunpack.c.l.b16 %v364
          %v508 = vunpack.c.l.b16 %v365
          %v509 = vunpack.c.l.b16 %v366
          %v510 = vunpack.c.l.b16 %v367
          %v511 = vunpack.c.l.b16 %v368
          %v512 = vunpack.c.l.b16 %v369
          %v513 = vunpack.c.l.b16 %v370
          %v514 = vunpack.c.l.b16 %v371
          %v515 = vunpack.c.l.b16 %v372
          %v516 = vunpack.c.l.b16 %v373
          %v517 = vunpack.c.l.b16 %v374
          %v518 = vunpack.c.l.b16 %v375
          %v519 = vunpack.c.l.b16 %v376
          %v520 = vunpack.c.l.b16 %v377
          %v521 = vunpack.c.l.b16 %v378
          %v522 = vunpack.c.l.b16 %v379
          %v523 = vunpack.c.l.b16 %v380
          %v524 = vunpack.c.l.b16 %v381
          %v525 = vunpack.c.l.b16 %v382
          %v526 = vunpack.c.l.b16 %v383
          %v527 = vunpack.c.l.b16 %v384
          %v528 = vunpack.c.l.b16 %v385
          %v529 = vunpack.c.l.b16 %v386
          %v530 = vunpack.c.l.b16 %v387
          %v531 = vunpack.c.l.b16 %v388
          %v532 = vunpack.c.l.b16 %v389
          %v533 = vunpack.c.l.b16 %v390
          %v534 = vunpack.c.l.b16 %v391
          %v535 = vunpack.c.l.b16 %v392
          %v536 = vunpack.c.l.b16 %v393
          %v537 = vunpack.c.l.b16 %v394
          %v538 = vunpack.c.l.b16 %v395
          %v539 = vunpack.c.l.b16 %v396
          %v540 = vunpack.c.l.b16 %v397
          %v541 = vpack.c.b16 %v478, %v477
          %v542 = vpack.c.b16 %v480, %v479
          %v543 = vpack.c.b16 %v482, %v481
          %v544 = vpack.c.b16 %v484, %v483
          %v545 = vpack.c.b16 %v486, %v485
          %v546 = vpack.c.b16 %v488, %v487
          %v547 = vpack.c.b16 %v490, %v489
          %v548 = vpack.c.b16 %v492, %v491
          %v549 = vpack.c.b16 %v494, %v493
          %v550 = vpack.c.b16 %v496, %v495
          %v551 = vpack.c.b16 %v498, %v497
          %v552 = vpack.c.b16 %v500, %v499
          %v553 = vpack.c.b16 %v502, %v501
          %v554 = vpack.c.b16 %v504, %v503
          %v555 = vpack.c.b16 %v506, %v505
          %v556 = vpack.c.b16 %v508, %v507
          %v557 = vpack.c.b16 %v510, %v509
          %v558 = vpack.c.b16 %v512, %v511
          %v559 = vpack.c.b16 %v514, %v513
          %v560 = vpack.c.b16 %v516, %v515
          %v561 = vpack.c.b16 %v518, %v517
          %v562 = vpack.c.b16 %v520, %v519
          %v563 = vpack.c.b16 %v522, %v521
          %v564 = vpack.c.b16 %v524, %v523
          %v565 = vpack.c.b16 %v526, %v525
          %v566 = vpack.c.b16 %v528, %v527
          %v567 = vpack.c.b16 %v530, %v529
          %v568 = vpack.c.b16 %v532, %v531
          %v569 = vpack.c.b16 %v534, %v533
          %v570 = vpack.c.b16 %v536, %v535
          %v571 = vpack.c.b16 %v538, %v537
          %v572 = vpack.c.b16 %v540, %v539
          %v581 = vunpack.c.l.b16 %v398
          %v582 = vunpack.c.l.b16 %v399
          %v583 = vunpack.c.l.b16 %v400
          %v584 = vunpack.c.l.b16 %v401
          %v585 = vunpack.c.l.b16 %v402
          %v586 = vunpack.c.l.b16 %v403
          %v587 = vunpack.c.l.b16 %v404
          %v588 = vunpack.c.l.b16 %v405
          %v589 = vpack.c.b16 %v582, %v581
          %v590 = vpack.c.b16 %v584, %v583
          %v591 = vpack.c.b16 %v586, %v585
          %v592 = vpack.c.b16 %v588, %v587
          %vm597 = vcmask 523264
          %v599 = vsel %vm597, %v541, 0
          %v602 = vsel %vm597, %v542, 0
          %v605 = vsel %vm597, %v543, 0
          %v608 = vsel %vm597, %v544, 0
          %v611 = vsel %vm597, %v545, 0
          %v614 = vsel %vm597, %v546, 0
          %v617 = vsel %vm597, %v547, 0
          %v620 = vsel %vm597, %v548, 0
          %v623 = vsel %vm597, %v549, 0
          %v626 = vsel %vm597, %v550, 0
          %v629 = vsel %vm597, %v551, 0
          %v632 = vsel %vm597, %v552, 0
          %v635 = vsel %vm597, %v553, 0
          %v638 = vsel %vm597, %v554, 0
          %v641 = vsel %vm597, %v555, 0
          %v644 = vsel %vm597, %v556, 0
          %v647 = vsel %vm597, %v557, 0
          %v650 = vsel %vm597, %v558, 0
          %v653 = vsel %vm597, %v559, 0
          %v656 = vsel %vm597, %v560, 0
          %v659 = vsel %vm597, %v561, 0
          %v662 = vsel %vm597, %v562, 0
          %v665 = vsel %vm597, %v563, 0
          %v668 = vsel %vm597, %v564, 0
          %v671 = vsel %vm597, %v565, 0
          %v674 = vsel %vm597, %v566, 0
          %v677 = vsel %vm597, %v567, 0
          %v680 = vsel %vm597, %v568, 0
          %v683 = vsel %vm597, %v569, 0
          %v686 = vsel %vm597, %v570, 0
          %v689 = vsel %vm597, %v571, 0
          %v692 = vsel %vm597, %v572, 0
          %694 = vmatprep.subr.bf16.mxu0 0
          %695 = vmatpush1.bf16.msra.mxu0 0
          %696 = vmatprep.subr.bf16.mxu0 0
          %697 = vmatpush1.bf16.msra.mxu0 0
          %698 = vmatprep.subr.bf16.mxu0 0
          %699 = vmatpush1.bf16.msra.mxu0 0
          %700 = vmatprep.subr.bf16.mxu0 0
          %701 = vmatpush1.bf16.msra.mxu0 0
          %702 = vmatprep.subr.bf16.mxu0 0
          %703 = vmatpush1.bf16.msra.mxu0 %v592
          %704 = vmatprep.subr.bf16.mxu0 0
          %705 = vmatpush1.bf16.msra.mxu0 %v591
          %706 = vmatprep.subr.bf16.mxu0 0
          %707 = vmatpush1.bf16.msra.mxu0 %v590
          %708 = vmatprep.subr.bf16.mxu0 0
          %709 = vmatpush1.bf16.msra.mxu0 %v589
          %710 = vmatprep.subr.bf16.mxu0 0
          %711 = vmatpush2.bf16.msra.mxu0 0
          %712 = vmatprep.subr.bf16.mxu0 0
          %713 = vmatpush2.bf16.msra.mxu0 0
          %714 = vmatprep.subr.bf16.mxu0 0
          %715 = vmatpush2.bf16.msra.mxu0 0
          %716 = vmatprep.subr.bf16.mxu0 0
          %717 = vmatpush2.bf16.msra.mxu0 0
          %718 = vmatprep.subr.bf16.mxu0 0
          %719 = vmatpush2.bf16.msra.mxu0 0
          %720 = vmatprep.subr.bf16.mxu0 0
          %721 = vmatpush2.bf16.msra.mxu0 0
          %722 = vmatprep.subr.bf16.mxu0 0
          %723 = vmatpush2.bf16.msra.mxu0 0
          %724 = vmatprep.subr.bf16.mxu0 0
          %725 = vmatpush2.bf16.msra.mxu0 0
          %726 = vmatprep.mubr.bf16.mxu0 0
          %727 = vmatmul.mubr.bf16.gmra.mxu0 %v599
          %v728 = vpop.f32.mrf.mxu0
          %v729 = vadd.f32 %v411, %v728
          %v730 = vpop.f32.mrf.mxu0
          %v731 = vpop.f32.mrf.mxu0
          %v732 = vadd.f32 %v411, %v731
          %v733 = vpop.f32.mrf.mxu0
          %734 = vmatprep.mubr.bf16.mxu0 0
          %735 = vmatmul.mubr.bf16.gmra.mxu0 %v602
          %v736 = vpop.f32.mrf.mxu0
          %v737 = vadd.f32 %v411, %v736
          %v738 = vpop.f32.mrf.mxu0
          %v739 = vpop.f32.mrf.mxu0
          %v740 = vadd.f32 %v411, %v739
          %v741 = vpop.f32.mrf.mxu0
          %742 = vmatprep.mubr.bf16.mxu0 0
          %743 = vmatmul.mubr.bf16.gmra.mxu0 %v605
          %v744 = vpop.f32.mrf.mxu0
          %v745 = vadd.f32 %v411, %v744
          %v746 = vpop.f32.mrf.mxu0
          %v747 = vpop.f32.mrf.mxu0
          %v748 = vadd.f32 %v411, %v747
          %v749 = vpop.f32.mrf.mxu0
          %750 = vmatprep.mubr.bf16.mxu0 0
          %751 = vmatmul.mubr.bf16.gmra.mxu0 %v608
          %v752 = vpop.f32.mrf.mxu0
          %v753 = vadd.f32 %v411, %v752
          %v754 = vpop.f32.mrf.mxu0
          %v755 = vpop.f32.mrf.mxu0
          %v756 = vadd.f32 %v411, %v755
          %v757 = vpop.f32.mrf.mxu0
          %758 = vmatprep.mubr.bf16.mxu0 0
          %759 = vmatmul.mubr.bf16.gmra.mxu0 %v611
          %v760 = vpop.f32.mrf.mxu0
          %v761 = vadd.f32 %v411, %v760
          %v762 = vpop.f32.mrf.mxu0
          %v763 = vpop.f32.mrf.mxu0
          %v764 = vadd.f32 %v411, %v763
          %v765 = vpop.f32.mrf.mxu0
          %766 = vmatprep.mubr.bf16.mxu0 0
          %767 = vmatmul.mubr.bf16.gmra.mxu0 %v614
          %v768 = vpop.f32.mrf.mxu0
          %v769 = vadd.f32 %v411, %v768
          %v770 = vpop.f32.mrf.mxu0
          %v771 = vpop.f32.mrf.mxu0
          %v772 = vadd.f32 %v411, %v771
          %v773 = vpop.f32.mrf.mxu0
          %774 = vmatprep.mubr.bf16.mxu0 0
          %775 = vmatmul.mubr.bf16.gmra.mxu0 %v617
          %v776 = vpop.f32.mrf.mxu0
          %v777 = vadd.f32 %v411, %v776
          %v778 = vpop.f32.mrf.mxu0
          %v779 = vpop.f32.mrf.mxu0
          %v780 = vadd.f32 %v411, %v779
          %v781 = vpop.f32.mrf.mxu0
          %782 = vmatprep.mubr.bf16.mxu0 0
          %783 = vmatmul.mubr.bf16.gmra.mxu0 %v620
          %v784 = vpop.f32.mrf.mxu0
          %v785 = vadd.f32 %v411, %v784
          %v786 = vpop.f32.mrf.mxu0
          %v787 = vpop.f32.mrf.mxu0
          %v788 = vadd.f32 %v411, %v787
          %v789 = vpop.f32.mrf.mxu0
          %790 = vmatprep.mubr.bf16.mxu0 0
          %791 = vmatmul.mubr.bf16.gmra.mxu0 %v623
          %v792 = vpop.f32.mrf.mxu0
          %v793 = vadd.f32 %v411, %v792
          %v794 = vpop.f32.mrf.mxu0
          %v795 = vpop.f32.mrf.mxu0
          %v796 = vadd.f32 %v411, %v795
          %v797 = vpop.f32.mrf.mxu0
          %798 = vmatprep.mubr.bf16.mxu0 0
          %799 = vmatmul.mubr.bf16.gmra.mxu0 %v626
          %v800 = vpop.f32.mrf.mxu0
          %v801 = vadd.f32 %v411, %v800
          %v802 = vpop.f32.mrf.mxu0
          %v803 = vpop.f32.mrf.mxu0
          %v804 = vadd.f32 %v411, %v803
          %v805 = vpop.f32.mrf.mxu0
          %806 = vmatprep.mubr.bf16.mxu0 0
          %807 = vmatmul.mubr.bf16.gmra.mxu0 %v629
          %v808 = vpop.f32.mrf.mxu0
          %v809 = vadd.f32 %v411, %v808
          %v810 = vpop.f32.mrf.mxu0
          %v811 = vpop.f32.mrf.mxu0
          %v812 = vadd.f32 %v411, %v811
          %v813 = vpop.f32.mrf.mxu0
          %814 = vmatprep.mubr.bf16.mxu0 0
          %815 = vmatmul.mubr.bf16.gmra.mxu0 %v632
          %v816 = vpop.f32.mrf.mxu0
          %v817 = vadd.f32 %v411, %v816
          %v818 = vpop.f32.mrf.mxu0
          %v819 = vpop.f32.mrf.mxu0
          %v820 = vadd.f32 %v411, %v819
          %v821 = vpop.f32.mrf.mxu0
          %822 = vmatprep.mubr.bf16.mxu0 0
          %823 = vmatmul.mubr.bf16.gmra.mxu0 %v635
          %v824 = vpop.f32.mrf.mxu0
          %v825 = vadd.f32 %v411, %v824
          %v826 = vpop.f32.mrf.mxu0
          %v827 = vpop.f32.mrf.mxu0
          %v828 = vadd.f32 %v411, %v827
          %v829 = vpop.f32.mrf.mxu0
          %830 = vmatprep.mubr.bf16.mxu0 0
          %831 = vmatmul.mubr.bf16.gmra.mxu0 %v638
          %v832 = vpop.f32.mrf.mxu0
          %v833 = vadd.f32 %v411, %v832
          %v834 = vpop.f32.mrf.mxu0
          %v835 = vpop.f32.mrf.mxu0
          %v836 = vadd.f32 %v411, %v835
          %v837 = vpop.f32.mrf.mxu0
          %838 = vmatprep.mubr.bf16.mxu0 0
          %839 = vmatmul.mubr.bf16.gmra.mxu0 %v641
          %v840 = vpop.f32.mrf.mxu0
          %v841 = vadd.f32 %v411, %v840
          %v842 = vpop.f32.mrf.mxu0
          %v843 = vpop.f32.mrf.mxu0
          %v844 = vadd.f32 %v411, %v843
          %v845 = vpop.f32.mrf.mxu0
          %846 = vmatprep.mubr.bf16.mxu0 0
          %847 = vmatmul.mubr.bf16.gmra.mxu0 %v644
          %v848 = vpop.f32.mrf.mxu0
          %v849 = vadd.f32 %v411, %v848
          %v850 = vpop.f32.mrf.mxu0
          %v851 = vpop.f32.mrf.mxu0
          %v852 = vadd.f32 %v411, %v851
          %v853 = vpop.f32.mrf.mxu0
          %854 = vmatprep.mubr.bf16.mxu0 0
          %855 = vmatmul.mubr.bf16.gmra.mxu0 %v647
          %v856 = vpop.f32.mrf.mxu0
          %v857 = vadd.f32 %v411, %v856
          %v858 = vpop.f32.mrf.mxu0
          %v859 = vpop.f32.mrf.mxu0
          %v860 = vadd.f32 %v411, %v859
          %v861 = vpop.f32.mrf.mxu0
          %862 = vmatprep.mubr.bf16.mxu0 0
          %863 = vmatmul.mubr.bf16.gmra.mxu0 %v650
          %v864 = vpop.f32.mrf.mxu0
          %v865 = vadd.f32 %v411, %v864
          %v866 = vpop.f32.mrf.mxu0
          %v867 = vpop.f32.mrf.mxu0
          %v868 = vadd.f32 %v411, %v867
          %v869 = vpop.f32.mrf.mxu0
          %870 = vmatprep.mubr.bf16.mxu0 0
          %871 = vmatmul.mubr.bf16.gmra.mxu0 %v653
          %v872 = vpop.f32.mrf.mxu0
          %v873 = vadd.f32 %v411, %v872
          %v874 = vpop.f32.mrf.mxu0
          %v875 = vpop.f32.mrf.mxu0
          %v876 = vadd.f32 %v411, %v875
          %v877 = vpop.f32.mrf.mxu0
          %878 = vmatprep.mubr.bf16.mxu0 0
          %879 = vmatmul.mubr.bf16.gmra.mxu0 %v656
          %v880 = vpop.f32.mrf.mxu0
          %v881 = vadd.f32 %v411, %v880
          %v882 = vpop.f32.mrf.mxu0
          %v883 = vpop.f32.mrf.mxu0
          %v884 = vadd.f32 %v411, %v883
          %v885 = vpop.f32.mrf.mxu0
          %886 = vmatprep.mubr.bf16.mxu0 0
          %887 = vmatmul.mubr.bf16.gmra.mxu0 %v659
          %v888 = vpop.f32.mrf.mxu0
          %v889 = vadd.f32 %v411, %v888
          %v890 = vpop.f32.mrf.mxu0
          %v891 = vpop.f32.mrf.mxu0
          %v892 = vadd.f32 %v411, %v891
          %v893 = vpop.f32.mrf.mxu0
          %894 = vmatprep.mubr.bf16.mxu0 0
          %895 = vmatmul.mubr.bf16.gmra.mxu0 %v662
          %v896 = vpop.f32.mrf.mxu0
          %v897 = vadd.f32 %v411, %v896
          %v898 = vpop.f32.mrf.mxu0
          %v899 = vpop.f32.mrf.mxu0
          %v900 = vadd.f32 %v411, %v899
          %v901 = vpop.f32.mrf.mxu0
          %902 = vmatprep.mubr.bf16.mxu0 0
          %903 = vmatmul.mubr.bf16.gmra.mxu0 %v665
          %v904 = vpop.f32.mrf.mxu0
          %v905 = vadd.f32 %v411, %v904
          %v906 = vpop.f32.mrf.mxu0
          %v907 = vpop.f32.mrf.mxu0
          %v908 = vadd.f32 %v411, %v907
          %v909 = vpop.f32.mrf.mxu0
          %910 = vmatprep.mubr.bf16.mxu0 0
          %911 = vmatmul.mubr.bf16.gmra.mxu0 %v668
          %v912 = vpop.f32.mrf.mxu0
          %v913 = vadd.f32 %v411, %v912
          %v914 = vpop.f32.mrf.mxu0
          %v915 = vpop.f32.mrf.mxu0
          %v916 = vadd.f32 %v411, %v915
          %v917 = vpop.f32.mrf.mxu0
          %918 = vmatprep.mubr.bf16.mxu0 0
          %919 = vmatmul.mubr.bf16.gmra.mxu0 %v671
          %v920 = vpop.f32.mrf.mxu0
          %v921 = vadd.f32 %v411, %v920
          %v922 = vpop.f32.mrf.mxu0
          %v923 = vpop.f32.mrf.mxu0
          %v924 = vadd.f32 %v411, %v923
          %v925 = vpop.f32.mrf.mxu0
          %926 = vmatprep.mubr.bf16.mxu0 0
          %927 = vmatmul.mubr.bf16.gmra.mxu0 %v674
          %v928 = vpop.f32.mrf.mxu0
          %v929 = vadd.f32 %v411, %v928
          %v930 = vpop.f32.mrf.mxu0
          %v931 = vpop.f32.mrf.mxu0
          %v932 = vadd.f32 %v411, %v931
          %v933 = vpop.f32.mrf.mxu0
          %934 = vmatprep.mubr.bf16.mxu0 0
          %935 = vmatmul.mubr.bf16.gmra.mxu0 %v677
          %v936 = vpop.f32.mrf.mxu0
          %v937 = vadd.f32 %v411, %v936
          %v938 = vpop.f32.mrf.mxu0
          %v939 = vpop.f32.mrf.mxu0
          %v940 = vadd.f32 %v411, %v939
          %v941 = vpop.f32.mrf.mxu0
          %942 = vmatprep.mubr.bf16.mxu0 0
          %943 = vmatmul.mubr.bf16.gmra.mxu0 %v680
          %v944 = vpop.f32.mrf.mxu0
          %v945 = vadd.f32 %v411, %v944
          %v946 = vpop.f32.mrf.mxu0
          %v947 = vpop.f32.mrf.mxu0
          %v948 = vadd.f32 %v411, %v947
          %v949 = vpop.f32.mrf.mxu0
          %950 = vmatprep.mubr.bf16.mxu0 0
          %951 = vmatmul.mubr.bf16.gmra.mxu0 %v683
          %v952 = vpop.f32.mrf.mxu0
          %v953 = vadd.f32 %v411, %v952
          %v954 = vpop.f32.mrf.mxu0
          %v955 = vpop.f32.mrf.mxu0
          %v956 = vadd.f32 %v411, %v955
          %v957 = vpop.f32.mrf.mxu0
          %958 = vmatprep.mubr.bf16.mxu0 0
          %959 = vmatmul.mubr.bf16.gmra.mxu0 %v686
          %v960 = vpop.f32.mrf.mxu0
          %v961 = vadd.f32 %v411, %v960
          %v962 = vpop.f32.mrf.mxu0
          %v963 = vpop.f32.mrf.mxu0
          %v964 = vadd.f32 %v411, %v963
          %v965 = vpop.f32.mrf.mxu0
          %966 = vmatprep.mubr.bf16.mxu0 0
          %967 = vmatmul.mubr.bf16.gmra.mxu0 %v689
          %v968 = vpop.f32.mrf.mxu0
          %v969 = vadd.f32 %v411, %v968
          %v970 = vpop.f32.mrf.mxu0
          %v971 = vpop.f32.mrf.mxu0
          %v972 = vadd.f32 %v411, %v971
          %v973 = vpop.f32.mrf.mxu0
          %974 = vmatprep.mubr.bf16.mxu0 0
          %975 = vmatmul.mubr.bf16.gmra.mxu0 %v692
          %v976 = vpop.f32.mrf.mxu0
          %v977 = vadd.f32 %v411, %v976
          %v978 = vpop.f32.mrf.mxu0
          %v979 = vpop.f32.mrf.mxu0
          %v980 = vadd.f32 %v411, %v979
          %v981 = vpop.f32.mrf.mxu0
          %982 = vdwg.mxu0
          %v983 = vld [vmem:[%s276] sm:$0xff]
          %v984 = vld [vmem:[%s276 + $0x8] sm:$0xff]
          %v985 = vld [vmem:[%s276 + $0x10] sm:$0xff]
          %v986 = vld [vmem:[%s276 + $0x18] sm:$0xff]
          %v987 = vld [vmem:[%s276 + $0x20] sm:$0xff]
          %v988 = vld [vmem:[%s276 + $0x28] sm:$0xff]
          %v989 = vld [vmem:[%s276 + $0x30] sm:$0xff]
          %v990 = vld [vmem:[%s276 + $0x38] sm:$0xff]
          %v991 = vld [vmem:[%s276 + $0x40] sm:$0xff]
          %v992 = vld [vmem:[%s276 + $0x48] sm:$0xff]
          %v993 = vld [vmem:[%s276 + $0x50] sm:$0xff]
          %v994 = vld [vmem:[%s276 + $0x58] sm:$0xff]
          %v995 = vld [vmem:[%s276 + $0x60] sm:$0xff]
          %v996 = vld [vmem:[%s276 + $0x68] sm:$0xff]
          %v997 = vld [vmem:[%s276 + $0x70] sm:$0xff]
          %v998 = vld [vmem:[%s276 + $0x78] sm:$0xff]
          %v999 = vld [vmem:[%s276 + $0x80] sm:$0xff]
          %v1000 = vld [vmem:[%s276 + $0x88] sm:$0xff]
          %v1001 = vld [vmem:[%s276 + $0x90] sm:$0xff]
          %v1002 = vld [vmem:[%s276 + $0x98] sm:$0xff]
          %v1003 = vld [vmem:[%s276 + $0xa0] sm:$0xff]
          %v1004 = vld [vmem:[%s276 + $0xa8] sm:$0xff]
          %v1005 = vld [vmem:[%s276 + $0xb0] sm:$0xff]
          %v1006 = vld [vmem:[%s276 + $0xb8] sm:$0xff]
          %v1007 = vld [vmem:[%s276 + $0xc0] sm:$0xff]
          %v1008 = vld [vmem:[%s276 + $0xc8] sm:$0xff]
          %v1009 = vld [vmem:[%s276 + $0xd0] sm:$0xff]
          %v1010 = vld [vmem:[%s276 + $0xd8] sm:$0xff]
          %v1011 = vld [vmem:[%s276 + $0xe0] sm:$0xff]
          %v1012 = vld [vmem:[%s276 + $0xe8] sm:$0xff]
          %v1013 = vld [vmem:[%s276 + $0xf0] sm:$0xff]
          %v1014 = vld [vmem:[%s276 + $0xf8] sm:$0xff]
          %v1015 = vld [vmem:[%s245] sm:$0xff]
          %v1016 = vld [vmem:[%s245 + $0x8] sm:$0xff]
          %v1017 = vld [vmem:[%s245 + $0x10] sm:$0xff]
          %v1018 = vld [vmem:[%s245 + $0x18] sm:$0xff]
          %v1019 = vld [vmem:[%s245 + $0x20] sm:$0xff]
          %v1020 = vld [vmem:[%s245 + $0x28] sm:$0xff]
          %v1021 = vld [vmem:[%s245 + $0x30] sm:$0xff]
          %v1022 = vld [vmem:[%s245 + $0x38] sm:$0xff]
          %v1023 = vld [vmem:[%s245 + $0x40] sm:$0xff]
          %v1024 = vld [vmem:[%s245 + $0x48] sm:$0xff]
          %v1025 = vld [vmem:[%s245 + $0x50] sm:$0xff]
          %v1026 = vld [vmem:[%s245 + $0x58] sm:$0xff]
          %v1027 = vld [vmem:[%s245 + $0x60] sm:$0xff]
          %v1028 = vld [vmem:[%s245 + $0x68] sm:$0xff]
          %v1029 = vld [vmem:[%s245 + $0x70] sm:$0xff]
          %v1030 = vld [vmem:[%s245 + $0x78] sm:$0xff]
          %v1031 = vld [vmem:[%s245 + $0x80] sm:$0xff]
          %v1032 = vld [vmem:[%s245 + $0x88] sm:$0xff]
          %v1033 = vld [vmem:[%s245 + $0x90] sm:$0xff]
          %v1034 = vld [vmem:[%s245 + $0x98] sm:$0xff]
          %v1035 = vld [vmem:[%s245 + $0xa0] sm:$0xff]
          %v1036 = vld [vmem:[%s245 + $0xa8] sm:$0xff]
          %v1037 = vld [vmem:[%s245 + $0xb0] sm:$0xff]
          %v1038 = vld [vmem:[%s245 + $0xb8] sm:$0xff]
          %v1039 = vld [vmem:[%s245 + $0xc0] sm:$0xff]
          %v1040 = vld [vmem:[%s245 + $0xc8] sm:$0xff]
          %v1041 = vld [vmem:[%s245 + $0xd0] sm:$0xff]
          %v1042 = vld [vmem:[%s245 + $0xd8] sm:$0xff]
          %v1043 = vld [vmem:[%s245 + $0xe0] sm:$0xff]
          %v1044 = vld [vmem:[%s245 + $0xe8] sm:$0xff]
          %v1045 = vld [vmem:[%s245 + $0xf0] sm:$0xff]
          %v1046 = vld [vmem:[%s245 + $0xf8] sm:$0xff]
          %v1047 = vld [vmem:[%s245 + $0x100] sm:$0xff]
          %v1048 = vld [vmem:[%s245 + $0x108] sm:$0xff]
          %v1049 = vld [vmem:[%s245 + $0x110] sm:$0xff]
          %v1050 = vld [vmem:[%s245 + $0x118] sm:$0xff]
          %v1051 = vld [vmem:[%s245 + $0x120] sm:$0xff]
          %v1052 = vld [vmem:[%s245 + $0x128] sm:$0xff]
          %v1053 = vld [vmem:[%s245 + $0x130] sm:$0xff]
          %v1054 = vld [vmem:[%s245 + $0x138] sm:$0xff]
          %v1055 = vld [vmem:[%s245 + $0x140] sm:$0xff]
          %v1056 = vld [vmem:[%s245 + $0x148] sm:$0xff]
          %v1057 = vld [vmem:[%s245 + $0x150] sm:$0xff]
          %v1058 = vld [vmem:[%s245 + $0x158] sm:$0xff]
          %v1059 = vld [vmem:[%s245 + $0x160] sm:$0xff]
          %v1060 = vld [vmem:[%s245 + $0x168] sm:$0xff]
          %v1061 = vld [vmem:[%s245 + $0x170] sm:$0xff]
          %v1062 = vld [vmem:[%s245 + $0x178] sm:$0xff]
          %v1063 = vld [vmem:[%s245 + $0x180] sm:$0xff]
          %v1064 = vld [vmem:[%s245 + $0x188] sm:$0xff]
          %v1065 = vld [vmem:[%s245 + $0x190] sm:$0xff]
          %v1066 = vld [vmem:[%s245 + $0x198] sm:$0xff]
          %v1067 = vld [vmem:[%s245 + $0x1a0] sm:$0xff]
          %v1068 = vld [vmem:[%s245 + $0x1a8] sm:$0xff]
          %v1069 = vld [vmem:[%s245 + $0x1b0] sm:$0xff]
          %v1070 = vld [vmem:[%s245 + $0x1b8] sm:$0xff]
          %v1071 = vld [vmem:[%s245 + $0x1c0] sm:$0xff]
          %v1072 = vld [vmem:[%s245 + $0x1c8] sm:$0xff]
          %v1073 = vld [vmem:[%s245 + $0x1d0] sm:$0xff]
          %v1074 = vld [vmem:[%s245 + $0x1d8] sm:$0xff]
          %v1075 = vld [vmem:[%s245 + $0x1e0] sm:$0xff]
          %v1076 = vld [vmem:[%s245 + $0x1e8] sm:$0xff]
          %v1077 = vld [vmem:[%s245 + $0x1f0] sm:$0xff]
          %v1078 = vld [vmem:[%s245 + $0x1f8] sm:$0xff]
          %v1079 = vpack.c.bf16 %v732, %v729
          %v1080 = vpack.c.bf16 %v740, %v737
          %v1081 = vpack.c.bf16 %v748, %v745
          %v1082 = vpack.c.bf16 %v756, %v753
          %v1083 = vpack.c.bf16 %v764, %v761
          %v1084 = vpack.c.bf16 %v772, %v769
          %v1085 = vpack.c.bf16 %v780, %v777
          %v1086 = vpack.c.bf16 %v788, %v785
          %v1087 = vpack.c.bf16 %v796, %v793
          %v1088 = vpack.c.bf16 %v804, %v801
          %v1089 = vpack.c.bf16 %v812, %v809
          %v1090 = vpack.c.bf16 %v820, %v817
          %v1091 = vpack.c.bf16 %v828, %v825
          %v1092 = vpack.c.bf16 %v836, %v833
          %v1093 = vpack.c.bf16 %v844, %v841
          %v1094 = vpack.c.bf16 %v852, %v849
          %v1095 = vpack.c.bf16 %v860, %v857
          %v1096 = vpack.c.bf16 %v868, %v865
          %v1097 = vpack.c.bf16 %v876, %v873
          %v1098 = vpack.c.bf16 %v884, %v881
          %v1099 = vpack.c.bf16 %v892, %v889
          %v1100 = vpack.c.bf16 %v900, %v897
          %v1101 = vpack.c.bf16 %v908, %v905
          %v1102 = vpack.c.bf16 %v916, %v913
          %v1103 = vpack.c.bf16 %v924, %v921
          %v1104 = vpack.c.bf16 %v932, %v929
          %v1105 = vpack.c.bf16 %v940, %v937
          %v1106 = vpack.c.bf16 %v948, %v945
          %v1107 = vpack.c.bf16 %v956, %v953
          %v1108 = vpack.c.bf16 %v964, %v961
          %v1109 = vpack.c.bf16 %v972, %v969
          %v1110 = vpack.c.bf16 %v980, %v977
          %v1175 = vunpack.c.l.b16 %v1015
          %v1176 = vunpack.c.h.b16 %v1015
          %v1177 = vunpack.c.l.b16 %v1016
          %v1178 = vunpack.c.h.b16 %v1016
          %v1179 = vunpack.c.l.b16 %v1017
          %v1180 = vunpack.c.h.b16 %v1017
          %v1181 = vunpack.c.l.b16 %v1018
          %v1182 = vunpack.c.h.b16 %v1018
          %v1183 = vunpack.c.l.b16 %v1019
          %v1184 = vunpack.c.h.b16 %v1019
          %v1185 = vunpack.c.l.b16 %v1020
          %v1186 = vunpack.c.h.b16 %v1020
          %v1187 = vunpack.c.l.b16 %v1021
          %v1188 = vunpack.c.h.b16 %v1021
          %v1189 = vunpack.c.l.b16 %v1022
          %v1190 = vunpack.c.h.b16 %v1022
          %v1191 = vunpack.c.l.b16 %v1023
          %v1192 = vunpack.c.h.b16 %v1023
          %v1193 = vunpack.c.l.b16 %v1024
          %v1194 = vunpack.c.h.b16 %v1024
          %v1195 = vunpack.c.l.b16 %v1025
          %v1196 = vunpack.c.h.b16 %v1025
          %v1197 = vunpack.c.l.b16 %v1026
          %v1198 = vunpack.c.h.b16 %v1026
          %v1199 = vunpack.c.l.b16 %v1027
          %v1200 = vunpack.c.h.b16 %v1027
          %v1201 = vunpack.c.l.b16 %v1028
          %v1202 = vunpack.c.h.b16 %v1028
          %v1203 = vunpack.c.l.b16 %v1029
          %v1204 = vunpack.c.h.b16 %v1029
          %v1205 = vunpack.c.l.b16 %v1030
          %v1206 = vunpack.c.h.b16 %v1030
          %v1207 = vunpack.c.l.b16 %v1031
          %v1208 = vunpack.c.h.b16 %v1031
          %v1209 = vunpack.c.l.b16 %v1032
          %v1210 = vunpack.c.h.b16 %v1032
          %v1211 = vunpack.c.l.b16 %v1033
          %v1212 = vunpack.c.h.b16 %v1033
          %v1213 = vunpack.c.l.b16 %v1034
          %v1214 = vunpack.c.h.b16 %v1034
          %v1215 = vunpack.c.l.b16 %v1035
          %v1216 = vunpack.c.h.b16 %v1035
          %v1217 = vunpack.c.l.b16 %v1036
          %v1218 = vunpack.c.h.b16 %v1036
          %v1219 = vunpack.c.l.b16 %v1037
          %v1220 = vunpack.c.h.b16 %v1037
          %v1221 = vunpack.c.l.b16 %v1038
          %v1222 = vunpack.c.h.b16 %v1038
          %v1223 = vunpack.c.l.b16 %v1039
          %v1224 = vunpack.c.h.b16 %v1039
          %v1225 = vunpack.c.l.b16 %v1040
          %v1226 = vunpack.c.h.b16 %v1040
          %v1227 = vunpack.c.l.b16 %v1041
          %v1228 = vunpack.c.h.b16 %v1041
          %v1229 = vunpack.c.l.b16 %v1042
          %v1230 = vunpack.c.h.b16 %v1042
          %v1231 = vunpack.c.l.b16 %v1043
          %v1232 = vunpack.c.h.b16 %v1043
          %v1233 = vunpack.c.l.b16 %v1044
          %v1234 = vunpack.c.h.b16 %v1044
          %v1235 = vunpack.c.l.b16 %v1045
          %v1236 = vunpack.c.h.b16 %v1045
          %v1237 = vunpack.c.l.b16 %v1046
          %v1238 = vunpack.c.h.b16 %v1046
          %v1239 = vunpack.c.l.b16 %v1047
          %v1240 = vunpack.c.h.b16 %v1047
          %v1241 = vunpack.c.l.b16 %v1048
          %v1242 = vunpack.c.h.b16 %v1048
          %v1243 = vunpack.c.l.b16 %v1049
          %v1244 = vunpack.c.h.b16 %v1049
          %v1245 = vunpack.c.l.b16 %v1050
          %v1246 = vunpack.c.h.b16 %v1050
          %v1247 = vunpack.c.l.b16 %v1051
          %v1248 = vunpack.c.h.b16 %v1051
          %v1249 = vunpack.c.l.b16 %v1052
          %v1250 = vunpack.c.h.b16 %v1052
          %v1251 = vunpack.c.l.b16 %v1053
          %v1252 = vunpack.c.h.b16 %v1053
          %v1253 = vunpack.c.l.b16 %v1054
          %v1254 = vunpack.c.h.b16 %v1054
          %v1255 = vunpack.c.l.b16 %v1055
          %v1256 = vunpack.c.h.b16 %v1055
          %v1257 = vunpack.c.l.b16 %v1056
          %v1258 = vunpack.c.h.b16 %v1056
          %v1259 = vunpack.c.l.b16 %v1057
          %v1260 = vunpack.c.h.b16 %v1057
          %v1261 = vunpack.c.l.b16 %v1058
          %v1262 = vunpack.c.h.b16 %v1058
          %v1263 = vunpack.c.l.b16 %v1059
          %v1264 = vunpack.c.h.b16 %v1059
          %v1265 = vunpack.c.l.b16 %v1060
          %v1266 = vunpack.c.h.b16 %v1060
          %v1267 = vunpack.c.l.b16 %v1061
          %v1268 = vunpack.c.h.b16 %v1061
          %v1269 = vunpack.c.l.b16 %v1062
          %v1270 = vunpack.c.h.b16 %v1062
          %v1271 = vunpack.c.l.b16 %v1063
          %v1272 = vunpack.c.h.b16 %v1063
          %v1273 = vunpack.c.l.b16 %v1064
          %v1274 = vunpack.c.h.b16 %v1064
          %v1275 = vunpack.c.l.b16 %v1065
          %v1276 = vunpack.c.h.b16 %v1065
          %v1277 = vunpack.c.l.b16 %v1066
          %v1278 = vunpack.c.h.b16 %v1066
          %v1279 = vunpack.c.l.b16 %v1067
          %v1280 = vunpack.c.h.b16 %v1067
          %v1281 = vunpack.c.l.b16 %v1068
          %v1282 = vunpack.c.h.b16 %v1068
          %v1283 = vunpack.c.l.b16 %v1069
          %v1284 = vunpack.c.h.b16 %v1069
          %v1285 = vunpack.c.l.b16 %v1070
          %v1286 = vunpack.c.h.b16 %v1070
          %v1287 = vunpack.c.l.b16 %v1071
          %v1288 = vunpack.c.h.b16 %v1071
          %v1289 = vunpack.c.l.b16 %v1072
          %v1290 = vunpack.c.h.b16 %v1072
          %v1291 = vunpack.c.l.b16 %v1073
          %v1292 = vunpack.c.h.b16 %v1073
          %v1293 = vunpack.c.l.b16 %v1074
          %v1294 = vunpack.c.h.b16 %v1074
          %v1295 = vunpack.c.l.b16 %v1075
          %v1296 = vunpack.c.h.b16 %v1075
          %v1297 = vunpack.c.l.b16 %v1076
          %v1298 = vunpack.c.h.b16 %v1076
          %v1299 = vunpack.c.l.b16 %v1077
          %v1300 = vunpack.c.h.b16 %v1077
          %v1301 = vunpack.c.l.b16 %v1078
          %v1302 = vunpack.c.h.b16 %v1078
          %v1303 = vpack.c.b16 %v1179, %v1175
          %v1304 = vpack.c.b16 %v1180, %v1176
          %v1305 = vpack.c.b16 %v1181, %v1177
          %v1306 = vpack.c.b16 %v1182, %v1178
          %v1307 = vpack.c.b16 %v1187, %v1183
          %v1308 = vpack.c.b16 %v1188, %v1184
          %v1309 = vpack.c.b16 %v1189, %v1185
          %v1310 = vpack.c.b16 %v1190, %v1186
          %v1311 = vpack.c.b16 %v1195, %v1191
          %v1312 = vpack.c.b16 %v1196, %v1192
          %v1313 = vpack.c.b16 %v1197, %v1193
          %v1314 = vpack.c.b16 %v1198, %v1194
          %v1315 = vpack.c.b16 %v1203, %v1199
          %v1316 = vpack.c.b16 %v1204, %v1200
          %v1317 = vpack.c.b16 %v1205, %v1201
          %v1318 = vpack.c.b16 %v1206, %v1202
          %v1319 = vpack.c.b16 %v1211, %v1207
          %v1320 = vpack.c.b16 %v1212, %v1208
          %v1321 = vpack.c.b16 %v1213, %v1209
          %v1322 = vpack.c.b16 %v1214, %v1210
          %v1323 = vpack.c.b16 %v1219, %v1215
          %v1324 = vpack.c.b16 %v1220, %v1216
          %v1325 = vpack.c.b16 %v1221, %v1217
          %v1326 = vpack.c.b16 %v1222, %v1218
          %v1327 = vpack.c.b16 %v1227, %v1223
          %v1328 = vpack.c.b16 %v1228, %v1224
          %v1329 = vpack.c.b16 %v1229, %v1225
          %v1330 = vpack.c.b16 %v1230, %v1226
          %v1331 = vpack.c.b16 %v1235, %v1231
          %v1332 = vpack.c.b16 %v1236, %v1232
          %v1333 = vpack.c.b16 %v1237, %v1233
          %v1334 = vpack.c.b16 %v1238, %v1234
          %v1335 = vpack.c.b16 %v1243, %v1239
          %v1336 = vpack.c.b16 %v1244, %v1240
          %v1337 = vpack.c.b16 %v1245, %v1241
          %v1338 = vpack.c.b16 %v1246, %v1242
          %v1339 = vpack.c.b16 %v1251, %v1247
          %v1340 = vpack.c.b16 %v1252, %v1248
          %v1341 = vpack.c.b16 %v1253, %v1249
          %v1342 = vpack.c.b16 %v1254, %v1250
          %v1343 = vpack.c.b16 %v1259, %v1255
          %v1344 = vpack.c.b16 %v1260, %v1256
          %v1345 = vpack.c.b16 %v1261, %v1257
          %v1346 = vpack.c.b16 %v1262, %v1258
          %v1347 = vpack.c.b16 %v1267, %v1263
          %v1348 = vpack.c.b16 %v1268, %v1264
          %v1349 = vpack.c.b16 %v1269, %v1265
          %v1350 = vpack.c.b16 %v1270, %v1266
          %v1351 = vpack.c.b16 %v1275, %v1271
          %v1352 = vpack.c.b16 %v1276, %v1272
          %v1353 = vpack.c.b16 %v1277, %v1273
          %v1354 = vpack.c.b16 %v1278, %v1274
          %v1355 = vpack.c.b16 %v1283, %v1279
          %v1356 = vpack.c.b16 %v1284, %v1280
          %v1357 = vpack.c.b16 %v1285, %v1281
          %v1358 = vpack.c.b16 %v1286, %v1282
          %v1359 = vpack.c.b16 %v1291, %v1287
          %v1360 = vpack.c.b16 %v1292, %v1288
          %v1361 = vpack.c.b16 %v1293, %v1289
          %v1362 = vpack.c.b16 %v1294, %v1290
          %v1363 = vpack.c.b16 %v1299, %v1295
          %v1364 = vpack.c.b16 %v1300, %v1296
          %v1365 = vpack.c.b16 %v1301, %v1297
          %v1366 = vpack.c.b16 %v1302, %v1298
          %1431 = vmatprep.subr.bf16.mxu0 0
          %1432 = vmatpush1.bf16.msra.mxu0 %v1086
          %1433 = vmatprep.subr.bf16.mxu0 0
          %1434 = vmatpush1.bf16.msra.mxu0 %v1085
          %1435 = vmatprep.subr.bf16.mxu0 0
          %1436 = vmatpush1.bf16.msra.mxu0 %v1084
          %1437 = vmatprep.subr.bf16.mxu0 0
          %1438 = vmatpush1.bf16.msra.mxu0 %v1083
          %1439 = vmatprep.subr.bf16.mxu0 0
          %1440 = vmatpush1.bf16.msra.mxu0 %v1082
          %1441 = vmatprep.subr.bf16.mxu0 0
          %1442 = vmatpush1.bf16.msra.mxu0 %v1081
          %1443 = vmatprep.subr.bf16.mxu0 0
          %1444 = vmatpush1.bf16.msra.mxu0 %v1080
          %1445 = vmatprep.subr.bf16.mxu0 0
          %1446 = vmatpush1.bf16.msra.mxu0 %v1079
          %1447 = vmatprep.subr.bf16.mxu0 0
          %1448 = vmatpush2.bf16.msra.mxu0 %v1094
          %1449 = vmatprep.subr.bf16.mxu0 0
          %1450 = vmatpush2.bf16.msra.mxu0 %v1093
          %1451 = vmatprep.subr.bf16.mxu0 0
          %1452 = vmatpush2.bf16.msra.mxu0 %v1092
          %1453 = vmatprep.subr.bf16.mxu0 0
          %1454 = vmatpush2.bf16.msra.mxu0 %v1091
          %1455 = vmatprep.subr.bf16.mxu0 0
          %1456 = vmatpush2.bf16.msra.mxu0 %v1090
          %1457 = vmatprep.subr.bf16.mxu0 0
          %1458 = vmatpush2.bf16.msra.mxu0 %v1089
          %1459 = vmatprep.subr.bf16.mxu0 0
          %1460 = vmatpush2.bf16.msra.mxu0 %v1088
          %1461 = vmatprep.subr.bf16.mxu0 0
          %1462 = vmatpush2.bf16.msra.mxu0 %v1087
          %1463 = vmatprep.mubr.bf16.mxu0 %v1304
          %1464 = vmatmul.mubr.bf16.gmra.mxu0 %v1303
          %v1465 = vpop.f32.mrf.mxu0
          %v1466 = vadd.f32 0.0, %v1465
          %v1467 = vpop.f32.mrf.mxu0
          %v1468 = vpop.f32.mrf.mxu0
          %v1469 = vadd.f32 0.0, %v1468
          %v1470 = vpop.f32.mrf.mxu0
          %1471 = vmatprep.mubr.bf16.mxu0 %v1308
          %1472 = vmatmul.mubr.bf16.gmra.mxu0 %v1307
          %v1473 = vpop.f32.mrf.mxu0
          %v1474 = vadd.f32 0.0, %v1473
          %v1475 = vpop.f32.mrf.mxu0
          %v1476 = vpop.f32.mrf.mxu0
          %v1477 = vadd.f32 0.0, %v1476
          %v1478 = vpop.f32.mrf.mxu0
          %1479 = vmatprep.mubr.bf16.mxu0 %v1312
          %1480 = vmatmul.mubr.bf16.gmra.mxu0 %v1311
          %v1481 = vpop.f32.mrf.mxu0
          %v1482 = vadd.f32 0.0, %v1481
          %v1483 = vpop.f32.mrf.mxu0
          %v1484 = vpop.f32.mrf.mxu0
          %v1485 = vadd.f32 0.0, %v1484
          %v1486 = vpop.f32.mrf.mxu0
          %1487 = vmatprep.mubr.bf16.mxu0 %v1316
          %1488 = vmatmul.mubr.bf16.gmra.mxu0 %v1315
          %v1489 = vpop.f32.mrf.mxu0
          %v1490 = vadd.f32 0.0, %v1489
          %v1491 = vpop.f32.mrf.mxu0
          %v1492 = vpop.f32.mrf.mxu0
          %v1493 = vadd.f32 0.0, %v1492
          %v1494 = vpop.f32.mrf.mxu0
          %1495 = vmatprep.mubr.bf16.mxu0 %v1320
          %1496 = vmatmul.mubr.bf16.gmra.mxu0 %v1319
          %v1497 = vpop.f32.mrf.mxu0
          %v1498 = vadd.f32 0.0, %v1497
          %v1499 = vpop.f32.mrf.mxu0
          %v1500 = vpop.f32.mrf.mxu0
          %v1501 = vadd.f32 0.0, %v1500
          %v1502 = vpop.f32.mrf.mxu0
          %1503 = vmatprep.mubr.bf16.mxu0 %v1324
          %1504 = vmatmul.mubr.bf16.gmra.mxu0 %v1323
          %v1505 = vpop.f32.mrf.mxu0
          %v1506 = vadd.f32 0.0, %v1505
          %v1507 = vpop.f32.mrf.mxu0
          %v1508 = vpop.f32.mrf.mxu0
          %v1509 = vadd.f32 0.0, %v1508
          %v1510 = vpop.f32.mrf.mxu0
          %1511 = vmatprep.mubr.bf16.mxu0 %v1328
          %1512 = vmatmul.mubr.bf16.gmra.mxu0 %v1327
          %v1513 = vpop.f32.mrf.mxu0
          %v1514 = vadd.f32 0.0, %v1513
          %v1515 = vpop.f32.mrf.mxu0
          %v1516 = vpop.f32.mrf.mxu0
          %v1517 = vadd.f32 0.0, %v1516
          %v1518 = vpop.f32.mrf.mxu0
          %1519 = vmatprep.mubr.bf16.mxu0 %v1332
          %1520 = vmatmul.mubr.bf16.gmra.mxu0 %v1331
          %v1521 = vpop.f32.mrf.mxu0
          %v1522 = vadd.f32 0.0, %v1521
          %v1523 = vpop.f32.mrf.mxu0
          %v1524 = vpop.f32.mrf.mxu0
          %v1525 = vadd.f32 0.0, %v1524
          %v1526 = vpop.f32.mrf.mxu0
          %1527 = vmatprep.mubr.bf16.mxu0 %v1336
          %1528 = vmatmul.mubr.bf16.gmra.mxu0 %v1335
          %v1529 = vpop.f32.mrf.mxu0
          %v1530 = vadd.f32 0.0, %v1529
          %v1531 = vpop.f32.mrf.mxu0
          %v1532 = vpop.f32.mrf.mxu0
          %v1533 = vadd.f32 0.0, %v1532
          %v1534 = vpop.f32.mrf.mxu0
          %1535 = vmatprep.mubr.bf16.mxu0 %v1340
          %1536 = vmatmul.mubr.bf16.gmra.mxu0 %v1339
          %v1537 = vpop.f32.mrf.mxu0
          %v1538 = vadd.f32 0.0, %v1537
          %v1539 = vpop.f32.mrf.mxu0
          %v1540 = vpop.f32.mrf.mxu0
          %v1541 = vadd.f32 0.0, %v1540
          %v1542 = vpop.f32.mrf.mxu0
          %1543 = vmatprep.mubr.bf16.mxu0 %v1344
          %1544 = vmatmul.mubr.bf16.gmra.mxu0 %v1343
          %v1545 = vpop.f32.mrf.mxu0
          %v1546 = vadd.f32 0.0, %v1545
          %v1547 = vpop.f32.mrf.mxu0
          %v1548 = vpop.f32.mrf.mxu0
          %v1549 = vadd.f32 0.0, %v1548
          %v1550 = vpop.f32.mrf.mxu0
          %1551 = vmatprep.mubr.bf16.mxu0 %v1348
          %1552 = vmatmul.mubr.bf16.gmra.mxu0 %v1347
          %v1553 = vpop.f32.mrf.mxu0
          %v1554 = vadd.f32 0.0, %v1553
          %v1555 = vpop.f32.mrf.mxu0
          %v1556 = vpop.f32.mrf.mxu0
          %v1557 = vadd.f32 0.0, %v1556
          %v1558 = vpop.f32.mrf.mxu0
          %1559 = vmatprep.mubr.bf16.mxu0 %v1352
          %1560 = vmatmul.mubr.bf16.gmra.mxu0 %v1351
          %v1561 = vpop.f32.mrf.mxu0
          %v1562 = vadd.f32 0.0, %v1561
          %v1563 = vpop.f32.mrf.mxu0
          %v1564 = vpop.f32.mrf.mxu0
          %v1565 = vadd.f32 0.0, %v1564
          %v1566 = vpop.f32.mrf.mxu0
          %1567 = vmatprep.mubr.bf16.mxu0 %v1356
          %1568 = vmatmul.mubr.bf16.gmra.mxu0 %v1355
          %v1569 = vpop.f32.mrf.mxu0
          %v1570 = vadd.f32 0.0, %v1569
          %v1571 = vpop.f32.mrf.mxu0
          %v1572 = vpop.f32.mrf.mxu0
          %v1573 = vadd.f32 0.0, %v1572
          %v1574 = vpop.f32.mrf.mxu0
          %1575 = vmatprep.mubr.bf16.mxu0 %v1360
          %1576 = vmatmul.mubr.bf16.gmra.mxu0 %v1359
          %v1577 = vpop.f32.mrf.mxu0
          %v1578 = vadd.f32 0.0, %v1577
          %v1579 = vpop.f32.mrf.mxu0
          %v1580 = vpop.f32.mrf.mxu0
          %v1581 = vadd.f32 0.0, %v1580
          %v1582 = vpop.f32.mrf.mxu0
          %1583 = vmatprep.mubr.bf16.mxu0 %v1364
          %1584 = vmatmul.mubr.bf16.gmra.mxu0 %v1363
          %v1585 = vpop.f32.mrf.mxu0
          %v1586 = vadd.f32 0.0, %v1585
          %v1587 = vpop.f32.mrf.mxu0
          %v1588 = vpop.f32.mrf.mxu0
          %v1589 = vadd.f32 0.0, %v1588
          %v1590 = vpop.f32.mrf.mxu0
          %1591 = vdwg.mxu0
          %1592 = vmatprep.subr.bf16.mxu0 0
          %1593 = vmatpush1.bf16.msra.mxu0 %v1102
          %1594 = vmatprep.subr.bf16.mxu0 0
          %1595 = vmatpush1.bf16.msra.mxu0 %v1101
          %1596 = vmatprep.subr.bf16.mxu0 0
          %1597 = vmatpush1.bf16.msra.mxu0 %v1100
          %1598 = vmatprep.subr.bf16.mxu0 0
          %1599 = vmatpush1.bf16.msra.mxu0 %v1099
          %1600 = vmatprep.subr.bf16.mxu0 0
          %1601 = vmatpush1.bf16.msra.mxu0 %v1098
          %1602 = vmatprep.subr.bf16.mxu0 0
          %1603 = vmatpush1.bf16.msra.mxu0 %v1097
          %1604 = vmatprep.subr.bf16.mxu0 0
          %1605 = vmatpush1.bf16.msra.mxu0 %v1096
          %1606 = vmatprep.subr.bf16.mxu0 0
          %1607 = vmatpush1.bf16.msra.mxu0 %v1095
          %1608 = vmatprep.subr.bf16.mxu0 0
          %1609 = vmatpush2.bf16.msra.mxu0 %v1110
          %1610 = vmatprep.subr.bf16.mxu0 0
          %1611 = vmatpush2.bf16.msra.mxu0 %v1109
          %1612 = vmatprep.subr.bf16.mxu0 0
          %1613 = vmatpush2.bf16.msra.mxu0 %v1108
          %1614 = vmatprep.subr.bf16.mxu0 0
          %1615 = vmatpush2.bf16.msra.mxu0 %v1107
          %1616 = vmatprep.subr.bf16.mxu0 0
          %1617 = vmatpush2.bf16.msra.mxu0 %v1106
          %1618 = vmatprep.subr.bf16.mxu0 0
          %1619 = vmatpush2.bf16.msra.mxu0 %v1105
          %1620 = vmatprep.subr.bf16.mxu0 0
          %1621 = vmatpush2.bf16.msra.mxu0 %v1104
          %1622 = vmatprep.subr.bf16.mxu0 0
          %1623 = vmatpush2.bf16.msra.mxu0 %v1103
          %1624 = vmatprep.mubr.bf16.mxu0 %v1306
          %1625 = vmatmul.mubr.bf16.gmra.mxu0 %v1305
          %v1626 = vpop.f32.mrf.mxu0
          %v1627 = vadd.f32 %v1466, %v1626
          %v1628 = vpop.f32.mrf.mxu0
          %v1629 = vpop.f32.mrf.mxu0
          %v1630 = vadd.f32 %v1469, %v1629
          %v1631 = vpop.f32.mrf.mxu0
          %1632 = vmatprep.mubr.bf16.mxu0 %v1310
          %1633 = vmatmul.mubr.bf16.gmra.mxu0 %v1309
          %v1634 = vpop.f32.mrf.mxu0
          %v1635 = vadd.f32 %v1474, %v1634
          %v1636 = vpop.f32.mrf.mxu0
          %v1637 = vpop.f32.mrf.mxu0
          %v1638 = vadd.f32 %v1477, %v1637
          %v1639 = vpop.f32.mrf.mxu0
          %1640 = vmatprep.mubr.bf16.mxu0 %v1314
          %1641 = vmatmul.mubr.bf16.gmra.mxu0 %v1313
          %v1642 = vpop.f32.mrf.mxu0
          %v1643 = vadd.f32 %v1482, %v1642
          %v1644 = vpop.f32.mrf.mxu0
          %v1645 = vpop.f32.mrf.mxu0
          %v1646 = vadd.f32 %v1485, %v1645
          %v1647 = vpop.f32.mrf.mxu0
          %1648 = vmatprep.mubr.bf16.mxu0 %v1318
          %1649 = vmatmul.mubr.bf16.gmra.mxu0 %v1317
          %v1650 = vpop.f32.mrf.mxu0
          %v1651 = vadd.f32 %v1490, %v1650
          %v1652 = vpop.f32.mrf.mxu0
          %v1653 = vpop.f32.mrf.mxu0
          %v1654 = vadd.f32 %v1493, %v1653
          %v1655 = vpop.f32.mrf.mxu0
          %1656 = vmatprep.mubr.bf16.mxu0 %v1322
          %1657 = vmatmul.mubr.bf16.gmra.mxu0 %v1321
          %v1658 = vpop.f32.mrf.mxu0
          %v1659 = vadd.f32 %v1498, %v1658
          %v1660 = vpop.f32.mrf.mxu0
          %v1661 = vpop.f32.mrf.mxu0
          %v1662 = vadd.f32 %v1501, %v1661
          %v1663 = vpop.f32.mrf.mxu0
          %1664 = vmatprep.mubr.bf16.mxu0 %v1326
          %1665 = vmatmul.mubr.bf16.gmra.mxu0 %v1325
          %v1666 = vpop.f32.mrf.mxu0
          %v1667 = vadd.f32 %v1506, %v1666
          %v1668 = vpop.f32.mrf.mxu0
          %v1669 = vpop.f32.mrf.mxu0
          %v1670 = vadd.f32 %v1509, %v1669
          %v1671 = vpop.f32.mrf.mxu0
          %1672 = vmatprep.mubr.bf16.mxu0 %v1330
          %1673 = vmatmul.mubr.bf16.gmra.mxu0 %v1329
          %v1674 = vpop.f32.mrf.mxu0
          %v1675 = vadd.f32 %v1514, %v1674
          %v1676 = vpop.f32.mrf.mxu0
          %v1677 = vpop.f32.mrf.mxu0
          %v1678 = vadd.f32 %v1517, %v1677
          %v1679 = vpop.f32.mrf.mxu0
          %1680 = vmatprep.mubr.bf16.mxu0 %v1334
          %1681 = vmatmul.mubr.bf16.gmra.mxu0 %v1333
          %v1682 = vpop.f32.mrf.mxu0
          %v1683 = vadd.f32 %v1522, %v1682
          %v1684 = vpop.f32.mrf.mxu0
          %v1685 = vpop.f32.mrf.mxu0
          %v1686 = vadd.f32 %v1525, %v1685
          %v1687 = vpop.f32.mrf.mxu0
          %1688 = vmatprep.mubr.bf16.mxu0 %v1338
          %1689 = vmatmul.mubr.bf16.gmra.mxu0 %v1337
          %v1690 = vpop.f32.mrf.mxu0
          %v1691 = vadd.f32 %v1530, %v1690
          %v1692 = vpop.f32.mrf.mxu0
          %v1693 = vpop.f32.mrf.mxu0
          %v1694 = vadd.f32 %v1533, %v1693
          %v1695 = vpop.f32.mrf.mxu0
          %1696 = vmatprep.mubr.bf16.mxu0 %v1342
          %1697 = vmatmul.mubr.bf16.gmra.mxu0 %v1341
          %v1698 = vpop.f32.mrf.mxu0
          %v1699 = vadd.f32 %v1538, %v1698
          %v1700 = vpop.f32.mrf.mxu0
          %v1701 = vpop.f32.mrf.mxu0
          %v1702 = vadd.f32 %v1541, %v1701
          %v1703 = vpop.f32.mrf.mxu0
          %1704 = vmatprep.mubr.bf16.mxu0 %v1346
          %1705 = vmatmul.mubr.bf16.gmra.mxu0 %v1345
          %v1706 = vpop.f32.mrf.mxu0
          %v1707 = vadd.f32 %v1546, %v1706
          %v1708 = vpop.f32.mrf.mxu0
          %v1709 = vpop.f32.mrf.mxu0
          %v1710 = vadd.f32 %v1549, %v1709
          %v1711 = vpop.f32.mrf.mxu0
          %1712 = vmatprep.mubr.bf16.mxu0 %v1350
          %1713 = vmatmul.mubr.bf16.gmra.mxu0 %v1349
          %v1714 = vpop.f32.mrf.mxu0
          %v1715 = vadd.f32 %v1554, %v1714
          %v1716 = vpop.f32.mrf.mxu0
          %v1717 = vpop.f32.mrf.mxu0
          %v1718 = vadd.f32 %v1557, %v1717
          %v1719 = vpop.f32.mrf.mxu0
          %1720 = vmatprep.mubr.bf16.mxu0 %v1354
          %1721 = vmatmul.mubr.bf16.gmra.mxu0 %v1353
          %v1722 = vpop.f32.mrf.mxu0
          %v1723 = vadd.f32 %v1562, %v1722
          %v1724 = vpop.f32.mrf.mxu0
          %v1725 = vpop.f32.mrf.mxu0
          %v1726 = vadd.f32 %v1565, %v1725
          %v1727 = vpop.f32.mrf.mxu0
          %1728 = vmatprep.mubr.bf16.mxu0 %v1358
          %1729 = vmatmul.mubr.bf16.gmra.mxu0 %v1357
          %v1730 = vpop.f32.mrf.mxu0
          %v1731 = vadd.f32 %v1570, %v1730
          %v1732 = vpop.f32.mrf.mxu0
          %v1733 = vpop.f32.mrf.mxu0
          %v1734 = vadd.f32 %v1573, %v1733
          %v1735 = vpop.f32.mrf.mxu0
          %1736 = vmatprep.mubr.bf16.mxu0 %v1362
          %1737 = vmatmul.mubr.bf16.gmra.mxu0 %v1361
          %v1738 = vpop.f32.mrf.mxu0
          %v1739 = vadd.f32 %v1578, %v1738
          %v1740 = vpop.f32.mrf.mxu0
          %v1741 = vpop.f32.mrf.mxu0
          %v1742 = vadd.f32 %v1581, %v1741
          %v1743 = vpop.f32.mrf.mxu0
          %1744 = vmatprep.mubr.bf16.mxu0 %v1366
          %1745 = vmatmul.mubr.bf16.gmra.mxu0 %v1365
          %v1746 = vpop.f32.mrf.mxu0
          %v1747 = vadd.f32 %v1586, %v1746
          %v1748 = vpop.f32.mrf.mxu0
          %v1749 = vpop.f32.mrf.mxu0
          %v1750 = vadd.f32 %v1589, %v1749
          %v1751 = vpop.f32.mrf.mxu0
          %1752 = vdwg.mxu0
          %v1753 = vadd.f32 %v983, %v1627
          %v1754 = vadd.f32 %v984, %v1630
          %v1755 = vadd.f32 %v985, %v1635
          %v1756 = vadd.f32 %v986, %v1638
          %v1757 = vadd.f32 %v987, %v1643
          %v1758 = vadd.f32 %v988, %v1646
          %v1759 = vadd.f32 %v989, %v1651
          %v1760 = vadd.f32 %v990, %v1654
          %v1761 = vadd.f32 %v991, %v1659
          %v1762 = vadd.f32 %v992, %v1662
          %v1763 = vadd.f32 %v993, %v1667
          %v1764 = vadd.f32 %v994, %v1670
          %v1765 = vadd.f32 %v995, %v1675
          %v1766 = vadd.f32 %v996, %v1678
          %v1767 = vadd.f32 %v997, %v1683
          %v1768 = vadd.f32 %v998, %v1686
          %v1769 = vadd.f32 %v999, %v1691
          %v1770 = vadd.f32 %v1000, %v1694
          %v1771 = vadd.f32 %v1001, %v1699
          %v1772 = vadd.f32 %v1002, %v1702
          %v1773 = vadd.f32 %v1003, %v1707
          %v1774 = vadd.f32 %v1004, %v1710
          %v1775 = vadd.f32 %v1005, %v1715
          %v1776 = vadd.f32 %v1006, %v1718
          %v1777 = vadd.f32 %v1007, %v1723
          %v1778 = vadd.f32 %v1008, %v1726
          %v1779 = vadd.f32 %v1009, %v1731
          %v1780 = vadd.f32 %v1010, %v1734
          %v1781 = vadd.f32 %v1011, %v1739
          %v1782 = vadd.f32 %v1012, %v1742
          %v1783 = vadd.f32 %v1013, %v1747
          %v1784 = vadd.f32 %v1014, %v1750
          %1785 = vst [vmem:[%s276] sm:$0xff] %v1753
          %1786 = vst [vmem:[%s276 + $0x8] sm:$0xff] %v1754
          %1787 = vst [vmem:[%s276 + $0x10] sm:$0xff] %v1755
          %1788 = vst [vmem:[%s276 + $0x18] sm:$0xff] %v1756
          %1789 = vst [vmem:[%s276 + $0x20] sm:$0xff] %v1757
          %1790 = vst [vmem:[%s276 + $0x28] sm:$0xff] %v1758
          %1791 = vst [vmem:[%s276 + $0x30] sm:$0xff] %v1759
          %1792 = vst [vmem:[%s276 + $0x38] sm:$0xff] %v1760
          %1793 = vst [vmem:[%s276 + $0x40] sm:$0xff] %v1761
          %1794 = vst [vmem:[%s276 + $0x48] sm:$0xff] %v1762
          %1795 = vst [vmem:[%s276 + $0x50] sm:$0xff] %v1763
          %1796 = vst [vmem:[%s276 + $0x58] sm:$0xff] %v1764
          %1797 = vst [vmem:[%s276 + $0x60] sm:$0xff] %v1765
          %1798 = vst [vmem:[%s276 + $0x68] sm:$0xff] %v1766
          %1799 = vst [vmem:[%s276 + $0x70] sm:$0xff] %v1767
          %1800 = vst [vmem:[%s276 + $0x78] sm:$0xff] %v1768
          %1801 = vst [vmem:[%s276 + $0x80] sm:$0xff] %v1769
          %1802 = vst [vmem:[%s276 + $0x88] sm:$0xff] %v1770
          %1803 = vst [vmem:[%s276 + $0x90] sm:$0xff] %v1771
          %1804 = vst [vmem:[%s276 + $0x98] sm:$0xff] %v1772
          %1805 = vst [vmem:[%s276 + $0xa0] sm:$0xff] %v1773
          %1806 = vst [vmem:[%s276 + $0xa8] sm:$0xff] %v1774
          %1807 = vst [vmem:[%s276 + $0xb0] sm:$0xff] %v1775
          %1808 = vst [vmem:[%s276 + $0xb8] sm:$0xff] %v1776
          %1809 = vst [vmem:[%s276 + $0xc0] sm:$0xff] %v1777
          %1810 = vst [vmem:[%s276 + $0xc8] sm:$0xff] %v1778
          %1811 = vst [vmem:[%s276 + $0xd0] sm:$0xff] %v1779
          %1812 = vst [vmem:[%s276 + $0xd8] sm:$0xff] %v1780
          %1813 = vst [vmem:[%s276 + $0xe0] sm:$0xff] %v1781
          %1814 = vst [vmem:[%s276 + $0xe8] sm:$0xff] %v1782
          %1815 = vst [vmem:[%s276 + $0xf0] sm:$0xff] %v1783
          %1816 = vst [vmem:[%s276 + $0xf8] sm:$0xff] %v1784
        $region48: #{tpu_custom_call.1} parent=35 // pred_fallthru
          _
        %s1817 = sand.u32 %s157, 1
        %s1818 = scalar_lea.sflag [#allocation7], %s1817
        %s1819 = sand.u32 %s157, 1
        %s1820 = smul.addr %s1819, 256
        %s1821 = scalar_lea.vmem [#allocation8], %s1820
        // Predicated region
        $region49: #{tpu_custom_call.1} parent=35 // pred_check
          %p1822 = pneg %p167
        $region50: #{tpu_custom_call.1} parent=35 // pred_check_branch
          %1824 = sbr.rel (%p1822) target = $region52
        $region51: #{tpu_custom_call.1} parent=35 // pred_region
          %s1825 = smul.u32 32, %s37
          %s1827 = ssub.s32 4096, 4096
          %1828 = vsyncadd %s1818, %s1827
          %s1829 = smul.addr %s1825, 128
          %s1830 = scalar_lea.hbm %s6, %s1829
          %s1831 = sshll.u32 %s1821, 4
          %s1832 = int_to_ptr.vmem [resolvable:$true] %s1831
          %1837 = dma.vmem_to_hbm [thread:$0]  %s1832, 4096, %s1830, %s1818, 128, 128, 8
        $region52: #{tpu_custom_call.1} parent=35 // pred_fallthru
          _
      $region36: #{tpu_custom_call.1} parent=5 // pred_fallthru
        _
      %p1838 = scmp.le.s32.totalorder 2, %s28
      // Predicated region
      $region53: #{tpu_custom_call.1} parent=5 // pred_check
        %p1839 = pneg %p1838
      $region54: #{tpu_custom_call.1} parent=5 // pred_check_branch
        %1841 = sbr.rel (%p1839) target = $region56
      $region55: #{tpu_custom_call.1} parent=5 // pred_region
        %s1842 = ssub.s32 %s28, 2
        // Predicated region
        $region57: #{tpu_custom_call.1} parent=55 // pred_check
          %p1843 = pneg %p173
        $region58: #{tpu_custom_call.1} parent=55 // pred_check_branch
          %1845 = sbr.rel (%p1843) target = $region60
        $region59: #{tpu_custom_call.1} parent=55 // pred_region
          %s1846 = sand.u32 %s158, 1
          %s1847 = scalar_lea.sflag [#allocation7], %s1846
          %s1848 = sand.u32 %s158, 1
          %s1849 = smul.addr %s1848, 256
          %s1850 = scalar_lea.vmem [#allocation8], %s1849
          %1851 = dma.done %s1847, 4096
        $region60: #{tpu_custom_call.1} parent=55 // pred_fallthru
          _
      $region56: #{tpu_custom_call.1} parent=5 // pred_fallthru
        _
    $region6: #{tpu_custom_call.1} parent=1 // loop_footer
      %s32 = sadd.s32 1, %s28
    $region7: #{tpu_custom_call.1} parent=1 // loop_footer_branch
      %27 = sbr.rel target = $region3
    $region8: #{tpu_custom_call.1} parent=1 // loop_exit
      _
    %1852 = vsyncpa [#allocation6], 1
    %s1853 = scalar_lea.sflag [#allocation6], 1
    %1854 = vsyncpa %s1853, 1
    %1855 = vsyncpa [#allocation7], 1
    %s1856 = scalar_lea.sflag [#allocation7], 1
    %1857 = vsyncpa %s1856, 1

</llo_original>
